<compile_context>
chip_gen: v6e
topology: v6e:2x2x1
jax: 0.10.0
libtpu: 0.0.40
codegen_flags: <defaults>
</compile_context>

<pallas_src>
import functools

import jax
import jax.numpy as jnp
from jax.experimental import pallas as pl
from jax.experimental.pallas import tpu as pltpu
import numpy as np


def _upsample_kernel(x_ref, w_ref, scale_ref, bias_ref,
                     ee_ref, eo_ref, oe_ref, oo_ref, *, H, W):
    """One (batch, channel-tile) step.

    x_ref:     (1, H*W, C1)            activations (channels-last, spatially flat)
    w_ref:     (C1, TC2)               1x1 conv weight tile
    scale_ref: (1, TC2), bias_ref: (1, TC2)   folded BatchNorm (f32)
    *_ref out: (1, H, W, TC2)          output quadrants:
               ee -> out[2h, 2w], eo -> out[2h, 2w+1],
               oe -> out[2h+1, 2w], oo -> out[2h+1, 2w+1]
    """
    x = x_ref[0]                                                      # (H*W, C1)

    # 1x1 conv (bias=False) == channel matmul on the MXU, f32 accumulate.
    y = jnp.dot(x, w_ref[...], preferred_element_type=jnp.float32)   # (H*W, TC2)

    # Folded BatchNorm (inference / running stats) + SiLU, in f32 on the VPU/EUP.
    y = y * scale_ref[...] + bias_ref[...]
    y = y * jax.nn.sigmoid(y)

    tc = y.shape[-1]
    y3 = y.reshape(H, W, tc)                                          # cheap re-tiling (W % 8 == 0)

    # --- bilinear x2, align_corners=False, via shift-and-add ---------------
    # out[2k]   = 0.25 * x[k-1] + 0.75 * x[k]   (edge-replicate at k=0)
    # out[2k+1] = 0.75 * x[k]   + 0.25 * x[k+1] (edge-replicate at k=in-1)
    # (exactly PyTorch's weights, incl. the negative source-coordinate clamp)

    # H direction (axis 0, a major dim -> shifts are just block copies).
    y_hm = jnp.concatenate([y3[:1], y3[:-1]], axis=0)                 # y3[h-1], edge-replicated
    y_hp = jnp.concatenate([y3[1:], y3[-1:]], axis=0)                 # y3[h+1], edge-replicated
    r_e = 0.75 * y3 + 0.25 * y_hm                                     # output rows 2h
    r_o = 0.75 * y3 + 0.25 * y_hp                                     # output rows 2h+1

    # W direction (axis 1, sublane dim -> small sublane shifts, XLU/VPU only).
    def w_interp(r):
        r_wm = jnp.concatenate([r[:, :1], r[:, :-1]], axis=1)         # r[:, w-1]
        r_wp = jnp.concatenate([r[:, 1:], r[:, -1:]], axis=1)         # r[:, w+1]
        return 0.75 * r + 0.25 * r_wm, 0.75 * r + 0.25 * r_wp

    ee, eo = w_interp(r_e)
    oe, oo = w_interp(r_o)

    ee_ref[0] = ee.astype(ee_ref.dtype)
    eo_ref[0] = eo.astype(eo_ref.dtype)
    oe_ref[0] = oe.astype(oe_ref.dtype)
    oo_ref[0] = oo.astype(oo_ref.dtype)


def upsample_forward(x_nchw, conv_w, gamma, beta, run_mean, run_var, *,
                     scale_factor=2, eps=1e-3,
                     compute_dtype=jnp.bfloat16, out_dtype=jnp.float32):
    """x_nchw: (N, C1, H, W). conv_w: (C2, C1, 1, 1). Returns (N, C2, 2H, 2W)."""
    N, C1, H, W = x_nchw.shape
    C2 = conv_w.shape[0]
    assert scale_factor == 2, "kernel is specialized for the module default scale_factor=2"
    OH, OW = 2 * H, 2 * W

    # Channel tile: lane-dense 128 when possible, otherwise the full C2.
    TC2 = 128 if (C2 % 128 == 0) else C2

    # ---- glue: layout + parameter folding (plain JAX, outside the kernel) ----
    x = jnp.transpose(x_nchw, (0, 2, 3, 1)).reshape(N, H * W, C1).astype(compute_dtype)
    w_mat = conv_w.reshape(C2, C1).T.astype(compute_dtype)            # (C1, C2)
    inv_std = gamma.astype(jnp.float32) / jnp.sqrt(run_var.astype(jnp.float32) + eps)
    bn_scale = inv_std.reshape(1, C2)
    bn_bias = (beta.astype(jnp.float32)
               - run_mean.astype(jnp.float32) * inv_std).reshape(1, C2)

    kernel = functools.partial(_upsample_kernel, H=H, W=W)
    quad = jax.ShapeDtypeStruct((N, H, W, C2), out_dtype)

    ee, eo, oe, oo = pl.pallas_call(
        kernel,
        out_shape=(quad, quad, quad, quad),
        grid=(N, C2 // TC2),
        in_specs=[
            pl.BlockSpec((1, H * W, C1), lambda n, c: (n, 0, 0)),
            pl.BlockSpec((C1, TC2), lambda n, c: (0, c)),
            pl.BlockSpec((1, TC2), lambda n, c: (0, c)),
            pl.BlockSpec((1, TC2), lambda n, c: (0, c)),
        ],
        out_specs=[
            pl.BlockSpec((1, H, W, TC2), lambda n, c: (n, 0, 0, c)),
            pl.BlockSpec((1, H, W, TC2), lambda n, c: (n, 0, 0, c)),
            pl.BlockSpec((1, H, W, TC2), lambda n, c: (n, 0, 0, c)),
            pl.BlockSpec((1, H, W, TC2), lambda n, c: (n, 0, 0, c)),
        ],
        compiler_params=pltpu.CompilerParams(
            dimension_semantics=("parallel", "parallel"),
            vmem_limit_bytes=48 * 1024 * 1024,   # explicit headroom; safe on v7x (64 MiB)
        ),
    )(x, w_mat, bn_scale, bn_bias)

    # Recombine quadrants + convert back to NCHW in one fused XLA copy.
    top = jnp.stack([ee, eo], axis=3)          # (N, H, W, 2, C2)
    bot = jnp.stack([oe, oo], axis=3)          # (N, H, W, 2, C2)
    out = jnp.stack([top, bot], axis=2)        # (N, H, 2, W, 2, C2)
    out = out.reshape(N, OH, OW, C2)
    return jnp.transpose(out, (0, 3, 1, 2))    # NCHW


def _reference(x_nchw, conv_w, gamma, beta, run_mean, run_var, *, scale_factor=2, eps=1e-3):
    """Pure-JAX reference with explicit PyTorch-style bilinear gather (for validation)."""
    N, C1, H, W = x_nchw.shape
    C2 = conv_w.shape[0]
    y = jnp.einsum('nchw,oc->nohw', x_nchw, conv_w.reshape(C2, C1))
    scale = gamma / jnp.sqrt(run_var + eps)
    y = y * scale[None, :, None, None] + (beta - run_mean * scale)[None, :, None, None]
    y = y * jax.nn.sigmoid(y)

    def idx_w(in_size, out_size):
        s = in_size / out_size
        src = np.maximum((np.arange(out_size) + 0.5) * s - 0.5, 0.0)
        i0 = np.minimum(np.floor(src).astype(np.int64), in_size - 1)
        i1 = np.minimum(i0 + 1, in_size - 1)
        w1 = src - i0
        return i0, i1, jnp.asarray(1.0 - w1, jnp.float32), jnp.asarray(w1, jnp.float32)

    h0, h1, wh0, wh1 = idx_w(H, scale_factor * H)
    w0, w1, ww0, ww1 = idx_w(W, scale_factor * W)
    yh = y[:, :, h0, :] * wh0[None, None, :, None] + y[:, :, h1, :] * wh1[None, None, :, None]
    out = yh[:, :, :, w0] * ww0[None, None, None, :] + yh[:, :, :, w1] * ww1[None, None, None, :]
    return out


if __name__ == "__main__":
    key = jax.random.PRNGKey(0)

    # ---- small-shape check (module-consistent tiny sizes) ----
    N, C1, C2, H, W = 2, 4, 8, 16, 16
    k_x, k_w, k_g, k_b, k_m, k_v = jax.random.split(key, 6)
    x = jax.random.normal(k_x, (N, C1, H, W), dtype=jnp.float32)
    conv_w = jax.random.normal(k_w, (C2, C1, 1, 1), dtype=jnp.float32) * 0.1
    gamma = 1.0 + 0.1 * jax.random.normal(k_g, (C2,), dtype=jnp.float32)
    beta = 0.1 * jax.random.normal(k_b, (C2,), dtype=jnp.float32)
    run_mean = 0.1 * jax.random.normal(k_m, (C2,), dtype=jnp.float32)
    run_var = jax.random.uniform(k_v, (C2,), dtype=jnp.float32, minval=0.5, maxval=1.5)
    # Note: BatchNorm is applied in inference form (running stats), the standard
    # deployment semantics for this block (eps=1e-3 per the YOLO Conv block).

    ref = _reference(x, conv_w, gamma, beta, run_mean, run_var)

    # Exact-semantics check in f32.
    out_f32 = upsample_forward(x, conv_w, gamma, beta, run_mean, run_var,
                               compute_dtype=jnp.float32)
    out_f32 = jax.block_until_ready(out_f32)
    assert out_f32.shape == (N, C2, 2 * H, 2 * W), out_f32.shape
    np.testing.assert_allclose(np.asarray(out_f32), np.asarray(ref), rtol=1e-4, atol=1e-4)

    # Default bf16-matmul (f32 accumulate) fast path.
    out_bf16 = jax.block_until_ready(
        upsample_forward(x, conv_w, gamma, beta, run_mean, run_var))
    np.testing.assert_allclose(np.asarray(out_bf16), np.asarray(ref), rtol=5e-2, atol=5e-2)

    # ---- larger, lane-aligned shape exercising the channel-tiling grid axis ----
    N2, C1b, C2b, H2, W2 = 2, 128, 256, 16, 16
    k_x, k_w, k_g, k_b, k_m, k_v = jax.random.split(jax.random.PRNGKey(1), 6)
    xb = jax.random.normal(k_x, (N2, C1b, H2, W2), dtype=jnp.float32)
    conv_wb = jax.random.normal(k_w, (C2b, C1b, 1, 1), dtype=jnp.float32) * 0.05
    gammab = 1.0 + 0.1 * jax.random.normal(k_g, (C2b,), dtype=jnp.float32)
    betab = 0.1 * jax.random.normal(k_b, (C2b,), dtype=jnp.float32)
    run_meanb = 0.1 * jax.random.normal(k_m, (C2b,), dtype=jnp.float32)
    run_varb = jax.random.uniform(k_v, (C2b,), dtype=jnp.float32, minval=0.5, maxval=1.5)

    out_big = jax.block_until_ready(
        upsample_forward(xb, conv_wb, gammab, betab, run_meanb, run_varb))
    ref_big = _reference(xb, conv_wb, gammab, betab, run_meanb, run_varb)
    assert out_big.shape == (N2, C2b, 2 * H2, 2 * W2), out_big.shape
    np.testing.assert_allclose(np.asarray(out_big), np.asarray(ref_big), rtol=5e-2, atol=5e-2)

    print("KERNEL_OK")
</pallas_src>

<mosaic_0001>
module attributes {stable_mosaic.version = 11 : i64} {
  func.func @_upsample_kernel(%arg0: i32, %arg1: i32, %arg2: memref<1x256x4xf32, #tpu.memory_space<vmem>>, %arg3: memref<4x8xf32, #tpu.memory_space<vmem>>, %arg4: memref<1x8xf32, #tpu.memory_space<vmem>>, %arg5: memref<1x8xf32, #tpu.memory_space<vmem>>, %arg6: memref<1x16x16x8xf32, #tpu.memory_space<vmem>>, %arg7: memref<1x16x16x8xf32, #tpu.memory_space<vmem>>, %arg8: memref<1x16x16x8xf32, #tpu.memory_space<vmem>>, %arg9: memref<1x16x16x8xf32, #tpu.memory_space<vmem>>) attributes {dimension_semantics = [#tpu.dimension_semantics<parallel>, #tpu.dimension_semantics<parallel>], iteration_bounds = array<i64: 2, 1>, scalar_prefetch = 0 : i64, scratch_operands = 0 : i64, tpu.core_type = #tpu.core_type<tc>, window_params = [{transform_indices = @transform_0, window_bounds = array<i64: 1, 256, 4>}, {transform_indices = @transform_1, window_bounds = array<i64: 4, 8>}, {transform_indices = @transform_2, window_bounds = array<i64: 1, 8>}, {transform_indices = @transform_3, window_bounds = array<i64: 1, 8>}, {transform_indices = @transform_4, window_bounds = array<i64: 1, 16, 16, 8>}, {transform_indices = @transform_5, window_bounds = array<i64: 1, 16, 16, 8>}, {transform_indices = @transform_6, window_bounds = array<i64: 1, 16, 16, 8>}, {transform_indices = @transform_7, window_bounds = array<i64: 1, 16, 16, 8>}]} {
    %c0 = arith.constant 0 : index
    %c0_0 = arith.constant 0 : index
    %c0_1 = arith.constant 0 : index
    %0 = vector.load %arg2[%c0, %c0_0, %c0_1] : memref<1x256x4xf32, #tpu.memory_space<vmem>>, vector<1x256x4xf32>
    %1 = vector.shape_cast %0 : vector<1x256x4xf32> to vector<256x4xf32>
    %c0_2 = arith.constant 0 : index
    %c0_3 = arith.constant 0 : index
    %2 = vector.load %arg3[%c0_2, %c0_3] : memref<4x8xf32, #tpu.memory_space<vmem>>, vector<4x8xf32>
    %cst = arith.constant dense<0.000000e+00> : vector<256x8xf32>
    %3 = tpu.matmul %1, %2, %cst {dimension_numbers = #tpu.dot_dimension_numbers<[1], [0], [0], [1], [0, 0, 1, 1], [], []>} : vector<256x4xf32>, vector<4x8xf32>, vector<256x8xf32> -> vector<256x8xf32>
    %c0_4 = arith.constant 0 : index
    %c0_5 = arith.constant 0 : index
    %4 = vector.load %arg4[%c0_4, %c0_5] : memref<1x8xf32, #tpu.memory_space<vmem>>, vector<1x8xf32>
    %5 = vector.broadcast %4 : vector<1x8xf32> to vector<256x8xf32>
    %6 = arith.mulf %3, %5 : vector<256x8xf32>
    %c0_6 = arith.constant 0 : index
    %c0_7 = arith.constant 0 : index
    %7 = vector.load %arg5[%c0_6, %c0_7] : memref<1x8xf32, #tpu.memory_space<vmem>>, vector<1x8xf32>
    %8 = vector.broadcast %7 : vector<1x8xf32> to vector<256x8xf32>
    %9 = arith.addf %6, %8 : vector<256x8xf32>
    %10 = arith.negf %9 : vector<256x8xf32>
    %11 = math.exp %10 : vector<256x8xf32>
    %cst_8 = arith.constant 1.000000e+00 : f32
    %12 = vector.broadcast %cst_8 : f32 to vector<256x8xf32>
    %13 = arith.addf %12, %11 : vector<256x8xf32>
    %14 = arith.divf %12, %13 : vector<256x8xf32>
    %15 = arith.mulf %9, %14 : vector<256x8xf32>
    %16 = vector.shape_cast %15 : vector<256x8xf32> to vector<16x16x8xf32>
    %17 = vector.extract_strided_slice %16 {offsets = [0, 0, 0], sizes = [1, 16, 8], strides = [1, 1, 1]} : vector<16x16x8xf32> to vector<1x16x8xf32>
    %18 = vector.extract_strided_slice %16 {offsets = [0, 0, 0], sizes = [15, 16, 8], strides = [1, 1, 1]} : vector<16x16x8xf32> to vector<15x16x8xf32>
    %19 = tpu.concatenate %17, %18 in 0 : vector<1x16x8xf32>, vector<15x16x8xf32> -> vector<16x16x8xf32>
    %20 = vector.extract_strided_slice %16 {offsets = [1, 0, 0], sizes = [15, 16, 8], strides = [1, 1, 1]} : vector<16x16x8xf32> to vector<15x16x8xf32>
    %21 = vector.extract_strided_slice %16 {offsets = [15, 0, 0], sizes = [1, 16, 8], strides = [1, 1, 1]} : vector<16x16x8xf32> to vector<1x16x8xf32>
    %22 = tpu.concatenate %20, %21 in 0 : vector<15x16x8xf32>, vector<1x16x8xf32> -> vector<16x16x8xf32>
    %cst_9 = arith.constant 7.500000e-01 : f32
    %23 = vector.broadcast %cst_9 : f32 to vector<16x16x8xf32>
    %24 = arith.mulf %23, %16 : vector<16x16x8xf32>
    %cst_10 = arith.constant 2.500000e-01 : f32
    %25 = vector.broadcast %cst_10 : f32 to vector<16x16x8xf32>
    %26 = arith.mulf %25, %19 : vector<16x16x8xf32>
    %27 = arith.addf %24, %26 : vector<16x16x8xf32>
    %cst_11 = arith.constant 7.500000e-01 : f32
    %28 = vector.broadcast %cst_11 : f32 to vector<16x16x8xf32>
    %29 = arith.mulf %28, %16 : vector<16x16x8xf32>
    %cst_12 = arith.constant 2.500000e-01 : f32
    %30 = vector.broadcast %cst_12 : f32 to vector<16x16x8xf32>
    %31 = arith.mulf %30, %22 : vector<16x16x8xf32>
    %32 = arith.addf %29, %31 : vector<16x16x8xf32>
    %33 = vector.extract_strided_slice %27 {offsets = [0, 0, 0], sizes = [16, 1, 8], strides = [1, 1, 1]} : vector<16x16x8xf32> to vector<16x1x8xf32>
    %34 = vector.extract_strided_slice %27 {offsets = [0, 0, 0], sizes = [16, 15, 8], strides = [1, 1, 1]} : vector<16x16x8xf32> to vector<16x15x8xf32>
    %35 = tpu.concatenate %33, %34 in 1 : vector<16x1x8xf32>, vector<16x15x8xf32> -> vector<16x16x8xf32>
    %36 = vector.extract_strided_slice %27 {offsets = [0, 1, 0], sizes = [16, 15, 8], strides = [1, 1, 1]} : vector<16x16x8xf32> to vector<16x15x8xf32>
    %37 = vector.extract_strided_slice %27 {offsets = [0, 15, 0], sizes = [16, 1, 8], strides = [1, 1, 1]} : vector<16x16x8xf32> to vector<16x1x8xf32>
    %38 = tpu.concatenate %36, %37 in 1 : vector<16x15x8xf32>, vector<16x1x8xf32> -> vector<16x16x8xf32>
    %cst_13 = arith.constant 7.500000e-01 : f32
    %39 = vector.broadcast %cst_13 : f32 to vector<16x16x8xf32>
    %40 = arith.mulf %39, %27 : vector<16x16x8xf32>
    %cst_14 = arith.constant 2.500000e-01 : f32
    %41 = vector.broadcast %cst_14 : f32 to vector<16x16x8xf32>
    %42 = arith.mulf %41, %35 : vector<16x16x8xf32>
    %43 = arith.addf %40, %42 : vector<16x16x8xf32>
    %cst_15 = arith.constant 7.500000e-01 : f32
    %44 = vector.broadcast %cst_15 : f32 to vector<16x16x8xf32>
    %45 = arith.mulf %44, %27 : vector<16x16x8xf32>
    %cst_16 = arith.constant 2.500000e-01 : f32
    %46 = vector.broadcast %cst_16 : f32 to vector<16x16x8xf32>
    %47 = arith.mulf %46, %38 : vector<16x16x8xf32>
    %48 = arith.addf %45, %47 : vector<16x16x8xf32>
    %49 = vector.extract_strided_slice %32 {offsets = [0, 0, 0], sizes = [16, 1, 8], strides = [1, 1, 1]} : vector<16x16x8xf32> to vector<16x1x8xf32>
    %50 = vector.extract_strided_slice %32 {offsets = [0, 0, 0], sizes = [16, 15, 8], strides = [1, 1, 1]} : vector<16x16x8xf32> to vector<16x15x8xf32>
    %51 = tpu.concatenate %49, %50 in 1 : vector<16x1x8xf32>, vector<16x15x8xf32> -> vector<16x16x8xf32>
    %52 = vector.extract_strided_slice %32 {offsets = [0, 1, 0], sizes = [16, 15, 8], strides = [1, 1, 1]} : vector<16x16x8xf32> to vector<16x15x8xf32>
    %53 = vector.extract_strided_slice %32 {offsets = [0, 15, 0], sizes = [16, 1, 8], strides = [1, 1, 1]} : vector<16x16x8xf32> to vector<16x1x8xf32>
    %54 = tpu.concatenate %52, %53 in 1 : vector<16x15x8xf32>, vector<16x1x8xf32> -> vector<16x16x8xf32>
    %cst_17 = arith.constant 7.500000e-01 : f32
    %55 = vector.broadcast %cst_17 : f32 to vector<16x16x8xf32>
    %56 = arith.mulf %55, %32 : vector<16x16x8xf32>
    %cst_18 = arith.constant 2.500000e-01 : f32
    %57 = vector.broadcast %cst_18 : f32 to vector<16x16x8xf32>
    %58 = arith.mulf %57, %51 : vector<16x16x8xf32>
    %59 = arith.addf %56, %58 : vector<16x16x8xf32>
    %cst_19 = arith.constant 7.500000e-01 : f32
    %60 = vector.broadcast %cst_19 : f32 to vector<16x16x8xf32>
    %61 = arith.mulf %60, %32 : vector<16x16x8xf32>
    %cst_20 = arith.constant 2.500000e-01 : f32
    %62 = vector.broadcast %cst_20 : f32 to vector<16x16x8xf32>
    %63 = arith.mulf %62, %54 : vector<16x16x8xf32>
    %64 = arith.addf %61, %63 : vector<16x16x8xf32>
    %c0_21 = arith.constant 0 : index
    %c0_22 = arith.constant 0 : index
    %c0_23 = arith.constant 0 : index
    %c0_24 = arith.constant 0 : index
    %65 = vector.load %arg6[%c0_21, %c0_22, %c0_23, %c0_24] : memref<1x16x16x8xf32, #tpu.memory_space<vmem>>, vector<1x16x16x8xf32>
    %66 = vector.shape_cast %65 : vector<1x16x16x8xf32> to vector<16x16x8xf32>
    %67 = vector.shape_cast %43 : vector<16x16x8xf32> to vector<1x16x16x8xf32>
    tpu.vector_store %arg6[%c0_21, %c0_22, %c0_23, %c0_24], %67 {strides = array<i32>} : memref<1x16x16x8xf32, #tpu.memory_space<vmem>>, vector<1x16x16x8xf32>,
    %c0_25 = arith.constant 0 : index
    %c0_26 = arith.constant 0 : index
    %c0_27 = arith.constant 0 : index
    %c0_28 = arith.constant 0 : index
    %68 = vector.load %arg7[%c0_25, %c0_26, %c0_27, %c0_28] : memref<1x16x16x8xf32, #tpu.memory_space<vmem>>, vector<1x16x16x8xf32>
    %69 = vector.shape_cast %68 : vector<1x16x16x8xf32> to vector<16x16x8xf32>
    %70 = vector.shape_cast %48 : vector<16x16x8xf32> to vector<1x16x16x8xf32>
    tpu.vector_store %arg7[%c0_25, %c0_26, %c0_27, %c0_28], %70 {strides = array<i32>} : memref<1x16x16x8xf32, #tpu.memory_space<vmem>>, vector<1x16x16x8xf32>,
    %c0_29 = arith.constant 0 : index
    %c0_30 = arith.constant 0 : index
    %c0_31 = arith.constant 0 : index
    %c0_32 = arith.constant 0 : index
    %71 = vector.load %arg8[%c0_29, %c0_30, %c0_31, %c0_32] : memref<1x16x16x8xf32, #tpu.memory_space<vmem>>, vector<1x16x16x8xf32>
    %72 = vector.shape_cast %71 : vector<1x16x16x8xf32> to vector<16x16x8xf32>
    %73 = vector.shape_cast %59 : vector<16x16x8xf32> to vector<1x16x16x8xf32>
    tpu.vector_store %arg8[%c0_29, %c0_30, %c0_31, %c0_32], %73 {strides = array<i32>} : memref<1x16x16x8xf32, #tpu.memory_space<vmem>>, vector<1x16x16x8xf32>,
    %c0_33 = arith.constant 0 : index
    %c0_34 = arith.constant 0 : index
    %c0_35 = arith.constant 0 : index
    %c0_36 = arith.constant 0 : index
    %74 = vector.load %arg9[%c0_33, %c0_34, %c0_35, %c0_36] : memref<1x16x16x8xf32, #tpu.memory_space<vmem>>, vector<1x16x16x8xf32>
    %75 = vector.shape_cast %74 : vector<1x16x16x8xf32> to vector<16x16x8xf32>
    %76 = vector.shape_cast %64 : vector<16x16x8xf32> to vector<1x16x16x8xf32>
    tpu.vector_store %arg9[%c0_33, %c0_34, %c0_35, %c0_36], %76 {strides = array<i32>} : memref<1x16x16x8xf32, #tpu.memory_space<vmem>>, vector<1x16x16x8xf32>,
    return
  }
  func.func @transform_0(%arg0: i32, %arg1: i32) -> (i32, i32, i32) {
    %c0_i32 = arith.constant 0 : i32
    %c0_i32_0 = arith.constant 0 : i32
    %c0_i32_1 = arith.constant 0 : i32
    return %arg0, %c0_i32, %c0_i32_0 : i32, i32, i32
  }
  func.func @transform_1(%arg0: i32, %arg1: i32) -> (i32, i32) {
    %c0_i32 = arith.constant 0 : i32
    %c0_i32_0 = arith.constant 0 : i32
    return %c0_i32, %arg1 : i32, i32
  }
  func.func @transform_2(%arg0: i32, %arg1: i32) -> (i32, i32) {
    %c0_i32 = arith.constant 0 : i32
    %c0_i32_0 = arith.constant 0 : i32
    return %c0_i32, %arg1 : i32, i32
  }
  func.func @transform_3(%arg0: i32, %arg1: i32) -> (i32, i32) {
    %c0_i32 = arith.constant 0 : i32
    %c0_i32_0 = arith.constant 0 : i32
    return %c0_i32, %arg1 : i32, i32
  }
  func.func @transform_4(%arg0: i32, %arg1: i32) -> (i32, i32, i32, i32) {
    %c0_i32 = arith.constant 0 : i32
    %c0_i32_0 = arith.constant 0 : i32
    %c0_i32_1 = arith.constant 0 : i32
    return %arg0, %c0_i32, %c0_i32_0, %arg1 : i32, i32, i32, i32
  }
  func.func @transform_5(%arg0: i32, %arg1: i32) -> (i32, i32, i32, i32) {
    %c0_i32 = arith.constant 0 : i32
    %c0_i32_0 = arith.constant 0 : i32
    %c0_i32_1 = arith.constant 0 : i32
    return %arg0, %c0_i32, %c0_i32_0, %arg1 : i32, i32, i32, i32
  }
  func.func @transform_6(%arg0: i32, %arg1: i32) -> (i32, i32, i32, i32) {
    %c0_i32 = arith.constant 0 : i32
    %c0_i32_0 = arith.constant 0 : i32
    %c0_i32_1 = arith.constant 0 : i32
    return %arg0, %c0_i32, %c0_i32_0, %arg1 : i32, i32, i32, i32
  }
  func.func @transform_7(%arg0: i32, %arg1: i32) -> (i32, i32, i32, i32) {
    %c0_i32 = arith.constant 0 : i32
    %c0_i32_0 = arith.constant 0 : i32
    %c0_i32_1 = arith.constant 0 : i32
    return %arg0, %c0_i32, %c0_i32_0, %arg1 : i32, i32, i32, i32
  }
}

</mosaic_0001>

<llo_original>
// kernel: tpu_custom_call.1
$region0: #{tpu_custom_call.1}
  #allocation0 [shape = 'u32[]', space=smem, size = 0x4, offset = 0x4, fixed_abs, tag = 'smem constant byte address 0x4 - core index']
  #allocation1 [shape = 'u32[144,128]{1,0:T(1,128)}', space=vmem, size = 0x12000, scoped, tag = 'internal scratch']
  %s0 = inlined_call_operand.vmem [shape: f32[2,256,4], index: 0, kind: input, shape index: {}]
  %s1 = inlined_call_operand.vmem [shape: f32[4,8], index: 1, kind: input, shape index: {}]
  %s2 = inlined_call_operand.vmem [shape: f32[1,8], index: 2, kind: input, shape index: {}]
  %s3 = inlined_call_operand.vmem [shape: f32[1,8], index: 3, kind: input, shape index: {}]
  %s4 = inlined_call_operand.vmem [shape: f32[2,16,16,8], index: 4, kind: output, shape index: {0}]
  %s5 = inlined_call_operand.vmem [shape: f32[2,16,16,8], index: 5, kind: output, shape index: {1}]
  %s6 = inlined_call_operand.vmem [shape: f32[2,16,16,8], index: 6, kind: output, shape index: {2}]
  %s7 = inlined_call_operand.vmem [shape: f32[2,16,16,8], index: 7, kind: output, shape index: {3}]
  %8 = xla_tuple %s4, %s5, %s6, %s7
  %s9 = sld [smem:[#allocation0]]
  $region73: #{tpu_custom_call.1} parent=0
    _
  %s11 = ssub.s32 1, %s9
  %s12 = scalar_select 0, %s11, %s9
  loop: start=0, step=1, limit=4
  $region2: #{tpu_custom_call.1} parent=0 // loop_pre_header
    _
  $region3: #{tpu_custom_call.1} parent=0 // loop_header
    %s14 = sphi 0, %s18
    %p15 = scmp.ge.s32.totalorder %s14, 4
    %s21 = sphi 0, %s33
    %s22 = sphi 0, %s29
    %s23 = sphi 0, %s21
    %s24 = sphi 0, %s22
    %s25 = sphi 0, %s23
    %s26 = sphi 0, %s24
    %s36 = sphi 0, %s38
    %s39 = sphi 0, %s36
    %s40 = sphi 0, %s39
    %s56 = sphi 0, %s40
    %s62 = sphi 0, %s64
    %s65 = sphi 0, %s62
    %s66 = sphi 0, %s65
    %s82 = sphi 0, %s66
    %s88 = sphi 0, %s90
    %s91 = sphi 0, %s88
    %s92 = sphi 0, %s91
    %s108 = sphi 0, %s92
    %s114 = sphi 0, %s116
    %s117 = sphi 0, %s114
    %s118 = sphi 0, %s117
    %s134 = sphi 0, %s118
    %s142 = sphi 0, %s144
    %s145 = sphi 0, %s142
    %s146 = sphi 0, %s145
    %s162 = sphi 0, %s146
    %s170 = sphi 0, %s172
    %s173 = sphi 0, %s170
    %s174 = sphi 0, %s173
    %s190 = sphi 0, %s174
    %s198 = sphi 0, %s200
    %s201 = sphi 0, %s198
    %s202 = sphi 0, %s201
    %s218 = sphi 0, %s202
    %s226 = sphi 0, %s228
    %s229 = sphi 0, %s226
    %s230 = sphi 0, %s229
    %s246 = sphi 0, %s230
  $region4: #{tpu_custom_call.1} parent=0 // loop_header_branch
    %17 = sbr.rel (%p15) target = $region8
  $region5: #{tpu_custom_call.1} parent=0 // loop_body
    %s19 = ssub.s32 %s14, 1
    %s20 = ssub.s32 %s14, 2
    %s27 = sadd.s32 1, %s22
    %p28 = scmp.ge.s32.totalorder %s27, 1
    %s29 = scalar_select %p28, 0, %s27
    %s30 = sadd.s32 1, %s21
    %s31 = scalar_select %p28, %s30, %s21
    %p32 = scmp.ge.s32.totalorder %s31, 2
    %s33 = scalar_select %p32, 0, %s31
    %s34 = ssub.s32 %s21, %s33
    %p35 = scmp.eq.s32.totalorder %s34, 0
    %s37 = sadd.s32 %s36, 1
    %s38 = scalar_select %p35, %s36, %s37
    %p41 = pneg %p35
    %p42 = scmp.eq.s32.totalorder %s14, 1
    %p43 = por %p41, %p42
    %p44 = scmp.ne.s32.totalorder %s36, %s39
    %p45 = scmp.eq.s32.totalorder %s14, 0
    %p46 = por %p44, %p45
    %p47 = scmp.ne.s32.totalorder %s36, %s39
    %p48 = scmp.eq.s32.totalorder %s19, 1
    %p49 = por %p47, %p48
    %p50 = scmp.ne.s32.totalorder %s39, %s40
    %p51 = scmp.eq.s32.totalorder %s19, 0
    %p52 = por %p50, %p51
    %p53 = scmp.ne.s32.totalorder %s39, %s40
    %p54 = scmp.eq.s32.totalorder %s20, 1
    %p55 = por %p53, %p54
    %p57 = scmp.ne.s32.totalorder %s40, %s56
    %p58 = scmp.eq.s32.totalorder %s20, 0
    %p59 = por %p57, %p58
    %s60 = ssub.s32 %s22, %s29
    %p61 = scmp.eq.s32.totalorder %s60, 0
    %s63 = sadd.s32 %s62, 1
    %s64 = scalar_select %p61, %s62, %s63
    %p67 = pneg %p61
    %p68 = scmp.eq.s32.totalorder %s14, 1
    %p69 = por %p67, %p68
    %p70 = scmp.ne.s32.totalorder %s62, %s65
    %p71 = scmp.eq.s32.totalorder %s14, 0
    %p72 = por %p70, %p71
    %p73 = scmp.ne.s32.totalorder %s62, %s65
    %p74 = scmp.eq.s32.totalorder %s19, 1
    %p75 = por %p73, %p74
    %p76 = scmp.ne.s32.totalorder %s65, %s66
    %p77 = scmp.eq.s32.totalorder %s19, 0
    %p78 = por %p76, %p77
    %p79 = scmp.ne.s32.totalorder %s65, %s66
    %p80 = scmp.eq.s32.totalorder %s20, 1
    %p81 = por %p79, %p80
    %p83 = scmp.ne.s32.totalorder %s66, %s82
    %p84 = scmp.eq.s32.totalorder %s20, 0
    %p85 = por %p83, %p84
    %s86 = ssub.s32 %s22, %s29
    %p87 = scmp.eq.s32.totalorder %s86, 0
    %s89 = sadd.s32 %s88, 1
    %s90 = scalar_select %p87, %s88, %s89
    %p93 = pneg %p87
    %p94 = scmp.eq.s32.totalorder %s14, 1
    %p95 = por %p93, %p94
    %p96 = scmp.ne.s32.totalorder %s88, %s91
    %p97 = scmp.eq.s32.totalorder %s14, 0
    %p98 = por %p96, %p97
    %p99 = scmp.ne.s32.totalorder %s88, %s91
    %p100 = scmp.eq.s32.totalorder %s19, 1
    %p101 = por %p99, %p100
    %p102 = scmp.ne.s32.totalorder %s91, %s92
    %p103 = scmp.eq.s32.totalorder %s19, 0
    %p104 = por %p102, %p103
    %p105 = scmp.ne.s32.totalorder %s91, %s92
    %p106 = scmp.eq.s32.totalorder %s20, 1
    %p107 = por %p105, %p106
    %p109 = scmp.ne.s32.totalorder %s92, %s108
    %p110 = scmp.eq.s32.totalorder %s20, 0
    %p111 = por %p109, %p110
    %s112 = ssub.s32 %s22, %s29
    %p113 = scmp.eq.s32.totalorder %s112, 0
    %s115 = sadd.s32 %s114, 1
    %s116 = scalar_select %p113, %s114, %s115
    %p119 = pneg %p113
    %p120 = scmp.eq.s32.totalorder %s14, 1
    %p121 = por %p119, %p120
    %p122 = scmp.ne.s32.totalorder %s114, %s117
    %p123 = scmp.eq.s32.totalorder %s14, 0
    %p124 = por %p122, %p123
    %p125 = scmp.ne.s32.totalorder %s114, %s117
    %p126 = scmp.eq.s32.totalorder %s19, 1
    %p127 = por %p125, %p126
    %p128 = scmp.ne.s32.totalorder %s117, %s118
    %p129 = scmp.eq.s32.totalorder %s19, 0
    %p130 = por %p128, %p129
    %p131 = scmp.ne.s32.totalorder %s117, %s118
    %p132 = scmp.eq.s32.totalorder %s20, 1
    %p133 = por %p131, %p132
    %p135 = scmp.ne.s32.totalorder %s118, %s134
    %p136 = scmp.eq.s32.totalorder %s20, 0
    %p137 = por %p135, %p136
    %s138 = ssub.s32 %s21, %s33
    %s139 = ssub.s32 %s22, %s29
    %s140 = sor.u32 %s138, %s139
    %p141 = scmp.eq.s32.totalorder %s140, 0
    %s143 = sadd.s32 %s142, 1
    %s144 = scalar_select %p141, %s142, %s143
    %p147 = pneg %p141
    %p148 = scmp.eq.s32.totalorder %s14, 1
    %p149 = por %p147, %p148
    %p150 = scmp.ne.s32.totalorder %s142, %s145
    %p151 = scmp.eq.s32.totalorder %s14, 0
    %p152 = por %p150, %p151
    %p153 = scmp.ne.s32.totalorder %s142, %s145
    %p154 = scmp.eq.s32.totalorder %s19, 1
    %p155 = por %p153, %p154
    %p156 = scmp.ne.s32.totalorder %s145, %s146
    %p157 = scmp.eq.s32.totalorder %s19, 0
    %p158 = por %p156, %p157
    %p159 = scmp.ne.s32.totalorder %s145, %s146
    %p160 = scmp.eq.s32.totalorder %s20, 1
    %p161 = por %p159, %p160
    %p163 = scmp.ne.s32.totalorder %s146, %s162
    %p164 = scmp.eq.s32.totalorder %s20, 0
    %p165 = por %p163, %p164
    %s166 = ssub.s32 %s21, %s33
    %s167 = ssub.s32 %s22, %s29
    %s168 = sor.u32 %s166, %s167
    %p169 = scmp.eq.s32.totalorder %s168, 0
    %s171 = sadd.s32 %s170, 1
    %s172 = scalar_select %p169, %s170, %s171
    %p175 = pneg %p169
    %p176 = scmp.eq.s32.totalorder %s14, 1
    %p177 = por %p175, %p176
    %p178 = scmp.ne.s32.totalorder %s170, %s173
    %p179 = scmp.eq.s32.totalorder %s14, 0
    %p180 = por %p178, %p179
    %p181 = scmp.ne.s32.totalorder %s170, %s173
    %p182 = scmp.eq.s32.totalorder %s19, 1
    %p183 = por %p181, %p182
    %p184 = scmp.ne.s32.totalorder %s173, %s174
    %p185 = scmp.eq.s32.totalorder %s19, 0
    %p186 = por %p184, %p185
    %p187 = scmp.ne.s32.totalorder %s173, %s174
    %p188 = scmp.eq.s32.totalorder %s20, 1
    %p189 = por %p187, %p188
    %p191 = scmp.ne.s32.totalorder %s174, %s190
    %p192 = scmp.eq.s32.totalorder %s20, 0
    %p193 = por %p191, %p192
    %s194 = ssub.s32 %s21, %s33
    %s195 = ssub.s32 %s22, %s29
    %s196 = sor.u32 %s194, %s195
    %p197 = scmp.eq.s32.totalorder %s196, 0
    %s199 = sadd.s32 %s198, 1
    %s200 = scalar_select %p197, %s198, %s199
    %p203 = pneg %p197
    %p204 = scmp.eq.s32.totalorder %s14, 1
    %p205 = por %p203, %p204
    %p206 = scmp.ne.s32.totalorder %s198, %s201
    %p207 = scmp.eq.s32.totalorder %s14, 0
    %p208 = por %p206, %p207
    %p209 = scmp.ne.s32.totalorder %s198, %s201
    %p210 = scmp.eq.s32.totalorder %s19, 1
    %p211 = por %p209, %p210
    %p212 = scmp.ne.s32.totalorder %s201, %s202
    %p213 = scmp.eq.s32.totalorder %s19, 0
    %p214 = por %p212, %p213
    %p215 = scmp.ne.s32.totalorder %s201, %s202
    %p216 = scmp.eq.s32.totalorder %s20, 1
    %p217 = por %p215, %p216
    %p219 = scmp.ne.s32.totalorder %s202, %s218
    %p220 = scmp.eq.s32.totalorder %s20, 0
    %p221 = por %p219, %p220
    %s222 = ssub.s32 %s21, %s33
    %s223 = ssub.s32 %s22, %s29
    %s224 = sor.u32 %s222, %s223
    %p225 = scmp.eq.s32.totalorder %s224, 0
    %s227 = sadd.s32 %s226, 1
    %s228 = scalar_select %p225, %s226, %s227
    %p231 = pneg %p225
    %p232 = scmp.eq.s32.totalorder %s14, 1
    %p233 = por %p231, %p232
    %p234 = scmp.ne.s32.totalorder %s226, %s229
    %p235 = scmp.eq.s32.totalorder %s14, 0
    %p236 = por %p234, %p235
    %p237 = scmp.ne.s32.totalorder %s226, %s229
    %p238 = scmp.eq.s32.totalorder %s19, 1
    %p239 = por %p237, %p238
    %p240 = scmp.ne.s32.totalorder %s229, %s230
    %p241 = scmp.eq.s32.totalorder %s19, 0
    %p242 = por %p240, %p241
    %p243 = scmp.ne.s32.totalorder %s229, %s230
    %p244 = scmp.eq.s32.totalorder %s20, 1
    %p245 = por %p243, %p244
    %p247 = scmp.ne.s32.totalorder %s230, %s246
    %p248 = scmp.eq.s32.totalorder %s20, 0
    %p249 = por %p247, %p248
    %p250 = scmp.le.s32.totalorder 1, %s14
    %p251 = scmp.lt.s32.totalorder %s14, 3
    %p252 = pnand %p250, %p251
    %p253 = pneg %p252
    // Predicated region
    $region9: #{tpu_custom_call.1} parent=5 // pred_check
      _
    $region10: #{tpu_custom_call.1} parent=5 // pred_check_branch
      %255 = sbr.rel (%p252) target = $region12
    $region11: #{tpu_custom_call.1} parent=5 // pred_region
      %s256 = ssub.s32 %s14, 1
      // Predicated region
      $region13: #{tpu_custom_call.1} parent=11 // pred_check
        %p257 = pneg %p78
      $region14: #{tpu_custom_call.1} parent=11 // pred_check_branch
        %259 = sbr.rel (%p257) target = $region16
      $region15: #{tpu_custom_call.1} parent=11 // pred_region
        %p260 = scmp.lt.s32.totalorder %s24, 0
        %s261 = scalar_select %p260, %s24, 0
        %s262 = smul.addr %s261, 4
        %s263 = scalar_lea.vmem %s1, %s262
      $region16: #{tpu_custom_call.1} parent=11 // pred_fallthru
        _
      // Predicated region
      $region17: #{tpu_custom_call.1} parent=11 // pred_check
        %p264 = pneg %p104
      $region18: #{tpu_custom_call.1} parent=11 // pred_check_branch
        %266 = sbr.rel (%p264) target = $region20
      $region19: #{tpu_custom_call.1} parent=11 // pred_region
        %p267 = scmp.lt.s32.totalorder %s24, 0
        %s268 = scalar_select %p267, %s24, 0
        %s269 = scalar_lea.vmem %s2, %s268
      $region20: #{tpu_custom_call.1} parent=11 // pred_fallthru
        _
      // Predicated region
      $region21: #{tpu_custom_call.1} parent=11 // pred_check
        %p270 = pneg %p130
      $region22: #{tpu_custom_call.1} parent=11 // pred_check_branch
        %272 = sbr.rel (%p270) target = $region24
      $region23: #{tpu_custom_call.1} parent=11 // pred_region
        %p273 = scmp.lt.s32.totalorder %s24, 0
        %s274 = scalar_select %p273, %s24, 0
        %s275 = scalar_lea.vmem %s3, %s274
      $region24: #{tpu_custom_call.1} parent=11 // pred_fallthru
        _
    $region12: #{tpu_custom_call.1} parent=5 // pred_fallthru
      _
    %p276 = scmp.lt.s32.totalorder %s14, 2
    // Predicated region
    $region25: #{tpu_custom_call.1} parent=5 // pred_check
      %p277 = pneg %p276
    $region26: #{tpu_custom_call.1} parent=5 // pred_check_branch
      %279 = sbr.rel (%p277) target = $region28
    $region27: #{tpu_custom_call.1} parent=5 // pred_region
      // Predicated region
      $region29: #{tpu_custom_call.1} parent=27 // pred_check
        %p280 = pneg %p46
      $region30: #{tpu_custom_call.1} parent=27 // pred_check_branch
        %282 = sbr.rel (%p280) target = $region32
      $region31: #{tpu_custom_call.1} parent=27 // pred_region
        %p283 = scmp.lt.s32.totalorder %s21, 1
        %s284 = scalar_select %p283, %s21, 1
        %s285 = smul.addr %s284, 32
        %s286 = smul.addr %s285, 8
        %s287 = scalar_lea.vmem %s0, %s286
      $region32: #{tpu_custom_call.1} parent=27 // pred_fallthru
        _
    $region28: #{tpu_custom_call.1} parent=5 // pred_fallthru
      _
    %p288 = scmp.le.s32.totalorder 1, %s14
    %p289 = scmp.lt.s32.totalorder %s14, 3
    %p290 = pnand %p288, %p289
    %p291 = pneg %p290
    // Predicated region
    $region33: #{tpu_custom_call.1} parent=5 // pred_check
      _
    $region34: #{tpu_custom_call.1} parent=5 // pred_check_branch
      %293 = sbr.rel (%p290) target = $region36
    $region35: #{tpu_custom_call.1} parent=5 // pred_region
      %s294 = ssub.s32 %s14, 1
      %p295 = scmp.lt.s32.totalorder %s23, 1
      %s296 = scalar_select %p295, %s23, 1
      %s297 = smul.addr %s296, 32
      %s298 = smul.addr %s297, 8
      %s299 = scalar_lea.vmem %s0, %s298
      %p300 = pneg %p52
      %p301 = pneg %p49
      %p302 = scmp.lt.s32.totalorder %s24, 0
      %s303 = scalar_select %p302, %s24, 0
      %s304 = smul.addr %s303, 4
      %s305 = scalar_lea.vmem %s1, %s304
      %p306 = pneg %p78
      %p307 = pneg %p75
      %p308 = scmp.lt.s32.totalorder %s24, 0
      %s309 = scalar_select %p308, %s24, 0
      %s310 = scalar_lea.vmem %s2, %s309
      %p311 = pneg %p104
      %p312 = pneg %p101
      %p313 = scmp.lt.s32.totalorder %s24, 0
      %s314 = scalar_select %p313, %s24, 0
      %s315 = scalar_lea.vmem %s3, %s314
      %p316 = pneg %p130
      %p317 = pneg %p127
      %p318 = pneg %p158
      %p319 = pneg %p155
      %p320 = scmp.lt.s32.totalorder %s23, 1
      %s321 = scalar_select %p320, %s23, 1
      %p322 = scmp.lt.s32.totalorder %s24, 0
      %s323 = scalar_select %p322, %s24, 0
      %s324 = smul.addr %s321, 32
      %s325 = sadd.s32 %s323, %s324
      %s326 = smul.addr %s325, 8
      %s327 = scalar_lea.vmem %s4, %s326
      %p328 = pneg %p186
      %p329 = pneg %p183
      %p330 = scmp.lt.s32.totalorder %s23, 1
      %s331 = scalar_select %p330, %s23, 1
      %p332 = scmp.lt.s32.totalorder %s24, 0
      %s333 = scalar_select %p332, %s24, 0
      %s334 = smul.addr %s331, 32
      %s335 = sadd.s32 %s333, %s334
      %s336 = smul.addr %s335, 8
      %s337 = scalar_lea.vmem %s5, %s336
      %p338 = pneg %p214
      %p339 = pneg %p211
      %p340 = scmp.lt.s32.totalorder %s23, 1
      %s341 = scalar_select %p340, %s23, 1
      %p342 = scmp.lt.s32.totalorder %s24, 0
      %s343 = scalar_select %p342, %s24, 0
      %s344 = smul.addr %s341, 32
      %s345 = sadd.s32 %s343, %s344
      %s346 = smul.addr %s345, 8
      %s347 = scalar_lea.vmem %s6, %s346
      %p348 = pneg %p242
      %p349 = pneg %p239
      %p350 = scmp.lt.s32.totalorder %s23, 1
      %s351 = scalar_select %p350, %s23, 1
      %p352 = scmp.lt.s32.totalorder %s24, 0
      %s353 = scalar_select %p352, %s24, 0
      %s354 = smul.addr %s351, 32
      %s355 = sadd.s32 %s353, %s354
      %s356 = smul.addr %s355, 8
      %s357 = scalar_lea.vmem %s7, %s356
      %p358 = scmp.lt.s32.totalorder %s23, 1
      %s359 = scalar_select %p358, %s23, 1
      %s360 = smul.addr %s359, 32
      %s361 = smul.addr %s360, 8
      %s362 = scalar_lea.vmem %s0, %s361
      %p363 = scmp.lt.s32.totalorder %s24, 0
      %s364 = scalar_select %p363, %s24, 0
      %s365 = smul.addr %s364, 4
      %s366 = scalar_lea.vmem %s1, %s365
      %p367 = scmp.lt.s32.totalorder %s24, 0
      %s368 = scalar_select %p367, %s24, 0
      %s369 = scalar_lea.vmem %s2, %s368
      %p370 = scmp.lt.s32.totalorder %s24, 0
      %s371 = scalar_select %p370, %s24, 0
      %s372 = scalar_lea.vmem %s3, %s371
      %p373 = scmp.lt.s32.totalorder %s23, 1
      %s374 = scalar_select %p373, %s23, 1
      %p375 = scmp.lt.s32.totalorder %s24, 0
      %s376 = scalar_select %p375, %s24, 0
      %s377 = smul.addr %s374, 32
      %s378 = sadd.s32 %s376, %s377
      %s379 = smul.addr %s378, 8
      %s380 = scalar_lea.vmem %s4, %s379
      %p381 = scmp.lt.s32.totalorder %s23, 1
      %s382 = scalar_select %p381, %s23, 1
      %p383 = scmp.lt.s32.totalorder %s24, 0
      %s384 = scalar_select %p383, %s24, 0
      %s385 = smul.addr %s382, 32
      %s386 = sadd.s32 %s384, %s385
      %s387 = smul.addr %s386, 8
      %s388 = scalar_lea.vmem %s5, %s387
      %p389 = scmp.lt.s32.totalorder %s23, 1
      %s390 = scalar_select %p389, %s23, 1
      %p391 = scmp.lt.s32.totalorder %s24, 0
      %s392 = scalar_select %p391, %s24, 0
      %s393 = smul.addr %s390, 32
      %s394 = sadd.s32 %s392, %s393
      %s395 = smul.addr %s394, 8
      %s396 = scalar_lea.vmem %s6, %s395
      %p397 = scmp.lt.s32.totalorder %s23, 1
      %s398 = scalar_select %p397, %s23, 1
      %p399 = scmp.lt.s32.totalorder %s24, 0
      %s400 = scalar_select %p399, %s24, 0
      %s401 = smul.addr %s398, 32
      %s402 = sadd.s32 %s400, %s401
      %s403 = smul.addr %s402, 8
      %s404 = scalar_lea.vmem %s7, %s403
      %v405 = vld [vmem:[%s362] sm:$0xff]
      %v406 = vld [vmem:[%s362 + $0x8] sm:$0xff]
      %v407 = vld [vmem:[%s362 + $0x10] sm:$0xff]
      %v408 = vld [vmem:[%s362 + $0x18] sm:$0xff]
      %v409 = vld [vmem:[%s362 + $0x20] sm:$0xff]
      %v410 = vld [vmem:[%s362 + $0x28] sm:$0xff]
      %v411 = vld [vmem:[%s362 + $0x30] sm:$0xff]
      %v412 = vld [vmem:[%s362 + $0x38] sm:$0xff]
      %v413 = vld [vmem:[%s362 + $0x40] sm:$0xff]
      %v414 = vld [vmem:[%s362 + $0x48] sm:$0xff]
      %v415 = vld [vmem:[%s362 + $0x50] sm:$0xff]
      %v416 = vld [vmem:[%s362 + $0x58] sm:$0xff]
      %v417 = vld [vmem:[%s362 + $0x60] sm:$0xff]
      %v418 = vld [vmem:[%s362 + $0x68] sm:$0xff]
      %v419 = vld [vmem:[%s362 + $0x70] sm:$0xff]
      %v420 = vld [vmem:[%s362 + $0x78] sm:$0xff]
      %v421 = vld [vmem:[%s362 + $0x80] sm:$0xff]
      %v422 = vld [vmem:[%s362 + $0x88] sm:$0xff]
      %v423 = vld [vmem:[%s362 + $0x90] sm:$0xff]
      %v424 = vld [vmem:[%s362 + $0x98] sm:$0xff]
      %v425 = vld [vmem:[%s362 + $0xa0] sm:$0xff]
      %v426 = vld [vmem:[%s362 + $0xa8] sm:$0xff]
      %v427 = vld [vmem:[%s362 + $0xb0] sm:$0xff]
      %v428 = vld [vmem:[%s362 + $0xb8] sm:$0xff]
      %v429 = vld [vmem:[%s362 + $0xc0] sm:$0xff]
      %v430 = vld [vmem:[%s362 + $0xc8] sm:$0xff]
      %v431 = vld [vmem:[%s362 + $0xd0] sm:$0xff]
      %v432 = vld [vmem:[%s362 + $0xd8] sm:$0xff]
      %v433 = vld [vmem:[%s362 + $0xe0] sm:$0xff]
      %v434 = vld [vmem:[%s362 + $0xe8] sm:$0xff]
      %v435 = vld [vmem:[%s362 + $0xf0] sm:$0xff]
      %v436 = vld [vmem:[%s362 + $0xf8] sm:$0xff]
      %v437 = vld [vmem:[%s366] sm:$0xf]
      %vm438 = vcmask 31744
      %v440 = vsel %vm438, %v405, 0
      %v443 = vsel %vm438, %v406, 0
      %v446 = vsel %vm438, %v407, 0
      %v449 = vsel %vm438, %v408, 0
      %v452 = vsel %vm438, %v409, 0
      %v455 = vsel %vm438, %v410, 0
      %v458 = vsel %vm438, %v411, 0
      %v461 = vsel %vm438, %v412, 0
      %v464 = vsel %vm438, %v413, 0
      %v467 = vsel %vm438, %v414, 0
      %v470 = vsel %vm438, %v415, 0
      %v473 = vsel %vm438, %v416, 0
      %v476 = vsel %vm438, %v417, 0
      %v479 = vsel %vm438, %v418, 0
      %v482 = vsel %vm438, %v419, 0
      %v485 = vsel %vm438, %v420, 0
      %v488 = vsel %vm438, %v421, 0
      %v491 = vsel %vm438, %v422, 0
      %v494 = vsel %vm438, %v423, 0
      %v497 = vsel %vm438, %v424, 0
      %v500 = vsel %vm438, %v425, 0
      %v503 = vsel %vm438, %v426, 0
      %v506 = vsel %vm438, %v427, 0
      %v509 = vsel %vm438, %v428, 0
      %v512 = vsel %vm438, %v429, 0
      %v515 = vsel %vm438, %v430, 0
      %v518 = vsel %vm438, %v431, 0
      %v521 = vsel %vm438, %v432, 0
      %v524 = vsel %vm438, %v433, 0
      %v527 = vsel %vm438, %v434, 0
      %v530 = vsel %vm438, %v435, 0
      %v533 = vsel %vm438, %v436, 0
      %vm535 = vcmask 1043456
      %v537 = vsel %vm535, %v437, 0
      %539 = vmatprep.subr.mxu0 0.0
      %540 = vmatpush1.msra.mxu0 0.0
      %541 = vmatprep.subr.mxu0 0.0
      %542 = vmatpush1.msra.mxu0 0.0
      %543 = vmatprep.subr.mxu0 0.0
      %544 = vmatpush1.msra.mxu0 0.0
      %545 = vmatprep.subr.mxu0 0.0
      %546 = vmatpush1.msra.mxu0 0.0
      %547 = vmatprep.subr.mxu0 0.0
      %548 = vmatpush1.msra.mxu0 0.0
      %549 = vmatprep.subr.mxu0 0.0
      %550 = vmatpush1.msra.mxu0 0.0
      %551 = vmatprep.subr.mxu0 0.0
      %552 = vmatpush1.msra.mxu0 0.0
      %553 = vmatprep.subr.mxu0 0.0
      %554 = vmatpush1.msra.mxu0 0.0
      %555 = vmatprep.subr.mxu0 0.0
      %556 = vmatpush1.msra.mxu0 0.0
      %557 = vmatprep.subr.mxu0 0.0
      %558 = vmatpush1.msra.mxu0 0.0
      %559 = vmatprep.subr.mxu0 0.0
      %560 = vmatpush1.msra.mxu0 0.0
      %561 = vmatprep.subr.mxu0 0.0
      %562 = vmatpush1.msra.mxu0 0.0
      %563 = vmatprep.subr.mxu0 0.0
      %564 = vmatpush1.msra.mxu0 0.0
      %565 = vmatprep.subr.mxu0 0.0
      %566 = vmatpush1.msra.mxu0 0.0
      %567 = vmatprep.subr.mxu0 0.0
      %568 = vmatpush1.msra.mxu0 0.0
      %569 = vmatprep.subr.mxu0 0.0
      %570 = vmatpush1.msra.mxu0 %v537
      %571 = vmatprep.subr.mxu0 0.0
      %572 = vmatpush2.msra.mxu0 0.0
      %573 = vmatprep.subr.mxu0 0.0
      %574 = vmatpush2.msra.mxu0 0.0
      %575 = vmatprep.subr.mxu0 0.0
      %576 = vmatpush2.msra.mxu0 0.0
      %577 = vmatprep.subr.mxu0 0.0
      %578 = vmatpush2.msra.mxu0 0.0
      %579 = vmatprep.subr.mxu0 0.0
      %580 = vmatpush2.msra.mxu0 0.0
      %581 = vmatprep.subr.mxu0 0.0
      %582 = vmatpush2.msra.mxu0 0.0
      %583 = vmatprep.subr.mxu0 0.0
      %584 = vmatpush2.msra.mxu0 0.0
      %585 = vmatprep.subr.mxu0 0.0
      %586 = vmatpush2.msra.mxu0 0.0
      %587 = vmatprep.subr.mxu0 0.0
      %588 = vmatpush2.msra.mxu0 0.0
      %589 = vmatprep.subr.mxu0 0.0
      %590 = vmatpush2.msra.mxu0 0.0
      %591 = vmatprep.subr.mxu0 0.0
      %592 = vmatpush2.msra.mxu0 0.0
      %593 = vmatprep.subr.mxu0 0.0
      %594 = vmatpush2.msra.mxu0 0.0
      %595 = vmatprep.subr.mxu0 0.0
      %596 = vmatpush2.msra.mxu0 0.0
      %597 = vmatprep.subr.mxu0 0.0
      %598 = vmatpush2.msra.mxu0 0.0
      %599 = vmatprep.subr.mxu0 0.0
      %600 = vmatpush2.msra.mxu0 0.0
      %601 = vmatprep.subr.mxu0 0.0
      %602 = vmatpush2.msra.mxu0 0.0
      %603 = vmatprep.mubr.f32.mxu0 0.0
      %604 = vmatmul.mubr.f32.gmra.mxu0 %v440
      %v605 = vpop.f32.mrf.mxu0
      %v606 = vadd.f32 0.0, %v605
      %v607 = vpop.f32.mrf.mxu0
      %608 = vmatprep.mubr.f32.mxu0 0.0
      %609 = vmatmul.mubr.f32.gmra.mxu0 %v443
      %v610 = vpop.f32.mrf.mxu0
      %v611 = vadd.f32 0.0, %v610
      %v612 = vpop.f32.mrf.mxu0
      %613 = vmatprep.mubr.f32.mxu0 0.0
      %614 = vmatmul.mubr.f32.gmra.mxu0 %v446
      %v615 = vpop.f32.mrf.mxu0
      %v616 = vadd.f32 0.0, %v615
      %v617 = vpop.f32.mrf.mxu0
      %618 = vmatprep.mubr.f32.mxu0 0.0
      %619 = vmatmul.mubr.f32.gmra.mxu0 %v449
      %v620 = vpop.f32.mrf.mxu0
      %v621 = vadd.f32 0.0, %v620
      %v622 = vpop.f32.mrf.mxu0
      %623 = vmatprep.mubr.f32.mxu0 0.0
      %624 = vmatmul.mubr.f32.gmra.mxu0 %v452
      %v625 = vpop.f32.mrf.mxu0
      %v626 = vadd.f32 0.0, %v625
      %v627 = vpop.f32.mrf.mxu0
      %628 = vmatprep.mubr.f32.mxu0 0.0
      %629 = vmatmul.mubr.f32.gmra.mxu0 %v455
      %v630 = vpop.f32.mrf.mxu0
      %v631 = vadd.f32 0.0, %v630
      %v632 = vpop.f32.mrf.mxu0
      %633 = vmatprep.mubr.f32.mxu0 0.0
      %634 = vmatmul.mubr.f32.gmra.mxu0 %v458
      %v635 = vpop.f32.mrf.mxu0
      %v636 = vadd.f32 0.0, %v635
      %v637 = vpop.f32.mrf.mxu0
      %638 = vmatprep.mubr.f32.mxu0 0.0
      %639 = vmatmul.mubr.f32.gmra.mxu0 %v461
      %v640 = vpop.f32.mrf.mxu0
      %v641 = vadd.f32 0.0, %v640
      %v642 = vpop.f32.mrf.mxu0
      %643 = vmatprep.mubr.f32.mxu0 0.0
      %644 = vmatmul.mubr.f32.gmra.mxu0 %v464
      %v645 = vpop.f32.mrf.mxu0
      %v646 = vadd.f32 0.0, %v645
      %v647 = vpop.f32.mrf.mxu0
      %648 = vmatprep.mubr.f32.mxu0 0.0
      %649 = vmatmul.mubr.f32.gmra.mxu0 %v467
      %v650 = vpop.f32.mrf.mxu0
      %v651 = vadd.f32 0.0, %v650
      %v652 = vpop.f32.mrf.mxu0
      %653 = vmatprep.mubr.f32.mxu0 0.0
      %654 = vmatmul.mubr.f32.gmra.mxu0 %v470
      %v655 = vpop.f32.mrf.mxu0
      %v656 = vadd.f32 0.0, %v655
      %v657 = vpop.f32.mrf.mxu0
      %658 = vmatprep.mubr.f32.mxu0 0.0
      %659 = vmatmul.mubr.f32.gmra.mxu0 %v473
      %v660 = vpop.f32.mrf.mxu0
      %v661 = vadd.f32 0.0, %v660
      %v662 = vpop.f32.mrf.mxu0
      %663 = vmatprep.mubr.f32.mxu0 0.0
      %664 = vmatmul.mubr.f32.gmra.mxu0 %v476
      %v665 = vpop.f32.mrf.mxu0
      %v666 = vadd.f32 0.0, %v665
      %v667 = vpop.f32.mrf.mxu0
      %668 = vmatprep.mubr.f32.mxu0 0.0
      %669 = vmatmul.mubr.f32.gmra.mxu0 %v479
      %v670 = vpop.f32.mrf.mxu0
      %v671 = vadd.f32 0.0, %v670
      %v672 = vpop.f32.mrf.mxu0
      %673 = vmatprep.mubr.f32.mxu0 0.0
      %674 = vmatmul.mubr.f32.gmra.mxu0 %v482
      %v675 = vpop.f32.mrf.mxu0
      %v676 = vadd.f32 0.0, %v675
      %v677 = vpop.f32.mrf.mxu0
      %678 = vmatprep.mubr.f32.mxu0 0.0
      %679 = vmatmul.mubr.f32.gmra.mxu0 %v485
      %v680 = vpop.f32.mrf.mxu0
      %v681 = vadd.f32 0.0, %v680
      %v682 = vpop.f32.mrf.mxu0
      %683 = vmatprep.mubr.f32.mxu0 0.0
      %684 = vmatmul.mubr.f32.gmra.mxu0 %v488
      %v685 = vpop.f32.mrf.mxu0
      %v686 = vadd.f32 0.0, %v685
      %v687 = vpop.f32.mrf.mxu0
      %688 = vmatprep.mubr.f32.mxu0 0.0
      %689 = vmatmul.mubr.f32.gmra.mxu0 %v491
      %v690 = vpop.f32.mrf.mxu0
      %v691 = vadd.f32 0.0, %v690
      %v692 = vpop.f32.mrf.mxu0
      %693 = vmatprep.mubr.f32.mxu0 0.0
      %694 = vmatmul.mubr.f32.gmra.mxu0 %v494
      %v695 = vpop.f32.mrf.mxu0
      %v696 = vadd.f32 0.0, %v695
      %v697 = vpop.f32.mrf.mxu0
      %698 = vmatprep.mubr.f32.mxu0 0.0
      %699 = vmatmul.mubr.f32.gmra.mxu0 %v497
      %v700 = vpop.f32.mrf.mxu0
      %v701 = vadd.f32 0.0, %v700
      %v702 = vpop.f32.mrf.mxu0
      %703 = vmatprep.mubr.f32.mxu0 0.0
      %704 = vmatmul.mubr.f32.gmra.mxu0 %v500
      %v705 = vpop.f32.mrf.mxu0
      %v706 = vadd.f32 0.0, %v705
      %v707 = vpop.f32.mrf.mxu0
      %708 = vmatprep.mubr.f32.mxu0 0.0
      %709 = vmatmul.mubr.f32.gmra.mxu0 %v503
      %v710 = vpop.f32.mrf.mxu0
      %v711 = vadd.f32 0.0, %v710
      %v712 = vpop.f32.mrf.mxu0
      %713 = vmatprep.mubr.f32.mxu0 0.0
      %714 = vmatmul.mubr.f32.gmra.mxu0 %v506
      %v715 = vpop.f32.mrf.mxu0
      %v716 = vadd.f32 0.0, %v715
      %v717 = vpop.f32.mrf.mxu0
      %718 = vmatprep.mubr.f32.mxu0 0.0
      %719 = vmatmul.mubr.f32.gmra.mxu0 %v509
      %v720 = vpop.f32.mrf.mxu0
      %v721 = vadd.f32 0.0, %v720
      %v722 = vpop.f32.mrf.mxu0
      %723 = vmatprep.mubr.f32.mxu0 0.0
      %724 = vmatmul.mubr.f32.gmra.mxu0 %v512
      %v725 = vpop.f32.mrf.mxu0
      %v726 = vadd.f32 0.0, %v725
      %v727 = vpop.f32.mrf.mxu0
      %728 = vmatprep.mubr.f32.mxu0 0.0
      %729 = vmatmul.mubr.f32.gmra.mxu0 %v515
      %v730 = vpop.f32.mrf.mxu0
      %v731 = vadd.f32 0.0, %v730
      %v732 = vpop.f32.mrf.mxu0
      %733 = vmatprep.mubr.f32.mxu0 0.0
      %734 = vmatmul.mubr.f32.gmra.mxu0 %v518
      %v735 = vpop.f32.mrf.mxu0
      %v736 = vadd.f32 0.0, %v735
      %v737 = vpop.f32.mrf.mxu0
      %738 = vmatprep.mubr.f32.mxu0 0.0
      %739 = vmatmul.mubr.f32.gmra.mxu0 %v521
      %v740 = vpop.f32.mrf.mxu0
      %v741 = vadd.f32 0.0, %v740
      %v742 = vpop.f32.mrf.mxu0
      %743 = vmatprep.mubr.f32.mxu0 0.0
      %744 = vmatmul.mubr.f32.gmra.mxu0 %v524
      %v745 = vpop.f32.mrf.mxu0
      %v746 = vadd.f32 0.0, %v745
      %v747 = vpop.f32.mrf.mxu0
      %748 = vmatprep.mubr.f32.mxu0 0.0
      %749 = vmatmul.mubr.f32.gmra.mxu0 %v527
      %v750 = vpop.f32.mrf.mxu0
      %v751 = vadd.f32 0.0, %v750
      %v752 = vpop.f32.mrf.mxu0
      %753 = vmatprep.mubr.f32.mxu0 0.0
      %754 = vmatmul.mubr.f32.gmra.mxu0 %v530
      %v755 = vpop.f32.mrf.mxu0
      %v756 = vadd.f32 0.0, %v755
      %v757 = vpop.f32.mrf.mxu0
      %758 = vmatprep.mubr.f32.mxu0 0.0
      %759 = vmatmul.mubr.f32.gmra.mxu0 %v533
      %v760 = vpop.f32.mrf.mxu0
      %v761 = vadd.f32 0.0, %v760
      %v762 = vpop.f32.mrf.mxu0
      %763 = vdwg.mxu0
      %v764 = vld [vmem:[%s369] sm:$0x1]
      %v766 = vlaneseq
      %v767 = vshrl.u32 %v766, 7
      %v768 = vsub.s32 0, %v767
      %v769 = vrot.slane %v764, %v768
      %v771 = vmul.f32 %v606, %v769
      %v772 = vmul.f32 %v611, %v769
      %v773 = vmul.f32 %v616, %v769
      %v774 = vmul.f32 %v621, %v769
      %v775 = vmul.f32 %v626, %v769
      %v776 = vmul.f32 %v631, %v769
      %v777 = vmul.f32 %v636, %v769
      %v778 = vmul.f32 %v641, %v769
      %v779 = vmul.f32 %v646, %v769
      %v780 = vmul.f32 %v651, %v769
      %v781 = vmul.f32 %v656, %v769
      %v782 = vmul.f32 %v661, %v769
      %v783 = vmul.f32 %v666, %v769
      %v784 = vmul.f32 %v671, %v769
      %v785 = vmul.f32 %v676, %v769
      %v786 = vmul.f32 %v681, %v769
      %v787 = vmul.f32 %v686, %v769
      %v788 = vmul.f32 %v691, %v769
      %v789 = vmul.f32 %v696, %v769
      %v790 = vmul.f32 %v701, %v769
      %v791 = vmul.f32 %v706, %v769
      %v792 = vmul.f32 %v711, %v769
      %v793 = vmul.f32 %v716, %v769
      %v794 = vmul.f32 %v721, %v769
      %v795 = vmul.f32 %v726, %v769
      %v796 = vmul.f32 %v731, %v769
      %v797 = vmul.f32 %v736, %v769
      %v798 = vmul.f32 %v741, %v769
      %v799 = vmul.f32 %v746, %v769
      %v800 = vmul.f32 %v751, %v769
      %v801 = vmul.f32 %v756, %v769
      %v802 = vmul.f32 %v761, %v769
      %v803 = vld [vmem:[%s372] sm:$0x1]
      %v805 = vlaneseq
      %v806 = vshrl.u32 %v805, 7
      %v807 = vsub.s32 0, %v806
      %v808 = vrot.slane %v803, %v807
      %v810 = vadd.f32 %v771, %v808
      %v811 = vadd.f32 %v772, %v808
      %v812 = vadd.f32 %v773, %v808
      %v813 = vadd.f32 %v774, %v808
      %v814 = vadd.f32 %v775, %v808
      %v815 = vadd.f32 %v776, %v808
      %v816 = vadd.f32 %v777, %v808
      %v817 = vadd.f32 %v778, %v808
      %v818 = vadd.f32 %v779, %v808
      %v819 = vadd.f32 %v780, %v808
      %v820 = vadd.f32 %v781, %v808
      %v821 = vadd.f32 %v782, %v808
      %v822 = vadd.f32 %v783, %v808
      %v823 = vadd.f32 %v784, %v808
      %v824 = vadd.f32 %v785, %v808
      %v825 = vadd.f32 %v786, %v808
      %v826 = vadd.f32 %v787, %v808
      %v827 = vadd.f32 %v788, %v808
      %v828 = vadd.f32 %v789, %v808
      %v829 = vadd.f32 %v790, %v808
      %v830 = vadd.f32 %v791, %v808
      %v831 = vadd.f32 %v792, %v808
      %v832 = vadd.f32 %v793, %v808
      %v833 = vadd.f32 %v794, %v808
      %v834 = vadd.f32 %v795, %v808
      %v835 = vadd.f32 %v796, %v808
      %v836 = vadd.f32 %v797, %v808
      %v837 = vadd.f32 %v798, %v808
      %v838 = vadd.f32 %v799, %v808
      %v839 = vadd.f32 %v800, %v808
      %v840 = vadd.f32 %v801, %v808
      %v841 = vadd.f32 %v802, %v808
      %v842 = vxor.u32 %v810, 2147483648
      %v843 = vxor.u32 %v811, 2147483648
      %v844 = vxor.u32 %v812, 2147483648
      %v845 = vxor.u32 %v813, 2147483648
      %v846 = vxor.u32 %v814, 2147483648
      %v847 = vxor.u32 %v815, 2147483648
      %v848 = vxor.u32 %v816, 2147483648
      %v849 = vxor.u32 %v817, 2147483648
      %v850 = vxor.u32 %v818, 2147483648
      %v851 = vxor.u32 %v819, 2147483648
      %v852 = vxor.u32 %v820, 2147483648
      %v853 = vxor.u32 %v821, 2147483648
      %v854 = vxor.u32 %v822, 2147483648
      %v855 = vxor.u32 %v823, 2147483648
      %v856 = vxor.u32 %v824, 2147483648
      %v857 = vxor.u32 %v825, 2147483648
      %v858 = vxor.u32 %v826, 2147483648
      %v859 = vxor.u32 %v827, 2147483648
      %v860 = vxor.u32 %v828, 2147483648
      %v861 = vxor.u32 %v829, 2147483648
      %v862 = vxor.u32 %v830, 2147483648
      %v863 = vxor.u32 %v831, 2147483648
      %v864 = vxor.u32 %v832, 2147483648
      %v865 = vxor.u32 %v833, 2147483648
      %v866 = vxor.u32 %v834, 2147483648
      %v867 = vxor.u32 %v835, 2147483648
      %v868 = vxor.u32 %v836, 2147483648
      %v869 = vxor.u32 %v837, 2147483648
      %v870 = vxor.u32 %v838, 2147483648
      %v871 = vxor.u32 %v839, 2147483648
      %v872 = vxor.u32 %v840, 2147483648
      %v873 = vxor.u32 %v841, 2147483648
      %v874 = vmul.f32 %v842, 1.442695
      %v875 = vpow.pop %v874
      %v876 = vmul.f32 %v843, 1.442695
      %v877 = vpow.pop %v876
      %v878 = vmul.f32 %v844, 1.442695
      %v879 = vpow.pop %v878
      %v880 = vmul.f32 %v845, 1.442695
      %v881 = vpow.pop %v880
      %v882 = vmul.f32 %v846, 1.442695
      %v883 = vpow.pop %v882
      %v884 = vmul.f32 %v847, 1.442695
      %v885 = vpow.pop %v884
      %v886 = vmul.f32 %v848, 1.442695
      %v887 = vpow.pop %v886
      %v888 = vmul.f32 %v849, 1.442695
      %v889 = vpow.pop %v888
      %v890 = vmul.f32 %v850, 1.442695
      %v891 = vpow.pop %v890
      %v892 = vmul.f32 %v851, 1.442695
      %v893 = vpow.pop %v892
      %v894 = vmul.f32 %v852, 1.442695
      %v895 = vpow.pop %v894
      %v896 = vmul.f32 %v853, 1.442695
      %v897 = vpow.pop %v896
      %v898 = vmul.f32 %v854, 1.442695
      %v899 = vpow.pop %v898
      %v900 = vmul.f32 %v855, 1.442695
      %v901 = vpow.pop %v900
      %v902 = vmul.f32 %v856, 1.442695
      %v903 = vpow.pop %v902
      %v904 = vmul.f32 %v857, 1.442695
      %v905 = vpow.pop %v904
      %v906 = vmul.f32 %v858, 1.442695
      %v907 = vpow.pop %v906
      %v908 = vmul.f32 %v859, 1.442695
      %v909 = vpow.pop %v908
      %v910 = vmul.f32 %v860, 1.442695
      %v911 = vpow.pop %v910
      %v912 = vmul.f32 %v861, 1.442695
      %v913 = vpow.pop %v912
      %v914 = vmul.f32 %v862, 1.442695
      %v915 = vpow.pop %v914
      %v916 = vmul.f32 %v863, 1.442695
      %v917 = vpow.pop %v916
      %v918 = vmul.f32 %v864, 1.442695
      %v919 = vpow.pop %v918
      %v920 = vmul.f32 %v865, 1.442695
      %v921 = vpow.pop %v920
      %v922 = vmul.f32 %v866, 1.442695
      %v923 = vpow.pop %v922
      %v924 = vmul.f32 %v867, 1.442695
      %v925 = vpow.pop %v924
      %v926 = vmul.f32 %v868, 1.442695
      %v927 = vpow.pop %v926
      %v928 = vmul.f32 %v869, 1.442695
      %v929 = vpow.pop %v928
      %v930 = vmul.f32 %v870, 1.442695
      %v931 = vpow.pop %v930
      %v932 = vmul.f32 %v871, 1.442695
      %v933 = vpow.pop %v932
      %v934 = vmul.f32 %v872, 1.442695
      %v935 = vpow.pop %v934
      %v936 = vmul.f32 %v873, 1.442695
      %v937 = vpow.pop %v936
      %v938 = vadd.f32 %v875, 1.0
      %v939 = vadd.f32 %v877, 1.0
      %v940 = vadd.f32 %v879, 1.0
      %v941 = vadd.f32 %v881, 1.0
      %v942 = vadd.f32 %v883, 1.0
      %v943 = vadd.f32 %v885, 1.0
      %v944 = vadd.f32 %v887, 1.0
      %v945 = vadd.f32 %v889, 1.0
      %v946 = vadd.f32 %v891, 1.0
      %v947 = vadd.f32 %v893, 1.0
      %v948 = vadd.f32 %v895, 1.0
      %v949 = vadd.f32 %v897, 1.0
      %v950 = vadd.f32 %v899, 1.0
      %v951 = vadd.f32 %v901, 1.0
      %v952 = vadd.f32 %v903, 1.0
      %v953 = vadd.f32 %v905, 1.0
      %v954 = vadd.f32 %v907, 1.0
      %v955 = vadd.f32 %v909, 1.0
      %v956 = vadd.f32 %v911, 1.0
      %v957 = vadd.f32 %v913, 1.0
      %v958 = vadd.f32 %v915, 1.0
      %v959 = vadd.f32 %v917, 1.0
      %v960 = vadd.f32 %v919, 1.0
      %v961 = vadd.f32 %v921, 1.0
      %v962 = vadd.f32 %v923, 1.0
      %v963 = vadd.f32 %v925, 1.0
      %v964 = vadd.f32 %v927, 1.0
      %v965 = vadd.f32 %v929, 1.0
      %v966 = vadd.f32 %v931, 1.0
      %v967 = vadd.f32 %v933, 1.0
      %v968 = vadd.f32 %v935, 1.0
      %v969 = vadd.f32 %v937, 1.0
      %v970 = vrcp.pop %v938
      %v971 = vmul.f32 1.0, %v970
      %v972 = vrcp.pop %v939
      %v973 = vmul.f32 1.0, %v972
      %v974 = vrcp.pop %v940
      %v975 = vmul.f32 1.0, %v974
      %v976 = vrcp.pop %v941
      %v977 = vmul.f32 1.0, %v976
      %v978 = vrcp.pop %v942
      %v979 = vmul.f32 1.0, %v978
      %v980 = vrcp.pop %v943
      %v981 = vmul.f32 1.0, %v980
      %v982 = vrcp.pop %v944
      %v983 = vmul.f32 1.0, %v982
      %v984 = vrcp.pop %v945
      %v985 = vmul.f32 1.0, %v984
      %v986 = vrcp.pop %v946
      %v987 = vmul.f32 1.0, %v986
      %v988 = vrcp.pop %v947
      %v989 = vmul.f32 1.0, %v988
      %v990 = vrcp.pop %v948
      %v991 = vmul.f32 1.0, %v990
      %v992 = vrcp.pop %v949
      %v993 = vmul.f32 1.0, %v992
      %v994 = vrcp.pop %v950
      %v995 = vmul.f32 1.0, %v994
      %v996 = vrcp.pop %v951
      %v997 = vmul.f32 1.0, %v996
      %v998 = vrcp.pop %v952
      %v999 = vmul.f32 1.0, %v998
      %v1000 = vrcp.pop %v953
      %v1001 = vmul.f32 1.0, %v1000
      %v1002 = vrcp.pop %v954
      %v1003 = vmul.f32 1.0, %v1002
      %v1004 = vrcp.pop %v955
      %v1005 = vmul.f32 1.0, %v1004
      %v1006 = vrcp.pop %v956
      %v1007 = vmul.f32 1.0, %v1006
      %v1008 = vrcp.pop %v957
      %v1009 = vmul.f32 1.0, %v1008
      %v1010 = vrcp.pop %v958
      %v1011 = vmul.f32 1.0, %v1010
      %v1012 = vrcp.pop %v959
      %v1013 = vmul.f32 1.0, %v1012
      %v1014 = vrcp.pop %v960
      %v1015 = vmul.f32 1.0, %v1014
      %v1016 = vrcp.pop %v961
      %v1017 = vmul.f32 1.0, %v1016
      %v1018 = vrcp.pop %v962
      %v1019 = vmul.f32 1.0, %v1018
      %v1020 = vrcp.pop %v963
      %v1021 = vmul.f32 1.0, %v1020
      %v1022 = vrcp.pop %v964
      %v1023 = vmul.f32 1.0, %v1022
      %v1024 = vrcp.pop %v965
      %v1025 = vmul.f32 1.0, %v1024
      %v1026 = vrcp.pop %v966
      %v1027 = vmul.f32 1.0, %v1026
      %v1028 = vrcp.pop %v967
      %v1029 = vmul.f32 1.0, %v1028
      %v1030 = vrcp.pop %v968
      %v1031 = vmul.f32 1.0, %v1030
      %v1032 = vrcp.pop %v969
      %v1033 = vmul.f32 1.0, %v1032
      %v1034 = vmul.f32 %v810, %v971
      %v1035 = vmul.f32 %v811, %v973
      %v1036 = vmul.f32 %v812, %v975
      %v1037 = vmul.f32 %v813, %v977
      %v1038 = vmul.f32 %v814, %v979
      %v1039 = vmul.f32 %v815, %v981
      %v1040 = vmul.f32 %v816, %v983
      %v1041 = vmul.f32 %v817, %v985
      %v1042 = vmul.f32 %v818, %v987
      %v1043 = vmul.f32 %v819, %v989
      %v1044 = vmul.f32 %v820, %v991
      %v1045 = vmul.f32 %v821, %v993
      %v1046 = vmul.f32 %v822, %v995
      %v1047 = vmul.f32 %v823, %v997
      %v1048 = vmul.f32 %v824, %v999
      %v1049 = vmul.f32 %v825, %v1001
      %v1050 = vmul.f32 %v826, %v1003
      %v1051 = vmul.f32 %v827, %v1005
      %v1052 = vmul.f32 %v828, %v1007
      %v1053 = vmul.f32 %v829, %v1009
      %v1054 = vmul.f32 %v830, %v1011
      %v1055 = vmul.f32 %v831, %v1013
      %v1056 = vmul.f32 %v832, %v1015
      %v1057 = vmul.f32 %v833, %v1017
      %v1058 = vmul.f32 %v834, %v1019
      %v1059 = vmul.f32 %v835, %v1021
      %v1060 = vmul.f32 %v836, %v1023
      %v1061 = vmul.f32 %v837, %v1025
      %v1062 = vmul.f32 %v838, %v1027
      %v1063 = vmul.f32 %v839, %v1029
      %v1064 = vmul.f32 %v840, %v1031
      %v1065 = vmul.f32 %v841, %v1033
      %v1066 = vmul.f32 %v1034, 0.75
      %v1067 = vmul.f32 %v1035, 0.75
      %v1068 = vmul.f32 %v1036, 0.75
      %v1069 = vmul.f32 %v1037, 0.75
      %v1070 = vmul.f32 %v1038, 0.75
      %v1071 = vmul.f32 %v1039, 0.75
      %v1072 = vmul.f32 %v1040, 0.75
      %v1073 = vmul.f32 %v1041, 0.75
      %v1074 = vmul.f32 %v1042, 0.75
      %v1075 = vmul.f32 %v1043, 0.75
      %v1076 = vmul.f32 %v1044, 0.75
      %v1077 = vmul.f32 %v1045, 0.75
      %v1078 = vmul.f32 %v1046, 0.75
      %v1079 = vmul.f32 %v1047, 0.75
      %v1080 = vmul.f32 %v1048, 0.75
      %v1081 = vmul.f32 %v1049, 0.75
      %v1082 = vmul.f32 %v1050, 0.75
      %v1083 = vmul.f32 %v1051, 0.75
      %v1084 = vmul.f32 %v1052, 0.75
      %v1085 = vmul.f32 %v1053, 0.75
      %v1086 = vmul.f32 %v1054, 0.75
      %v1087 = vmul.f32 %v1055, 0.75
      %v1088 = vmul.f32 %v1056, 0.75
      %v1089 = vmul.f32 %v1057, 0.75
      %v1090 = vmul.f32 %v1058, 0.75
      %v1091 = vmul.f32 %v1059, 0.75
      %v1092 = vmul.f32 %v1060, 0.75
      %v1093 = vmul.f32 %v1061, 0.75
      %v1094 = vmul.f32 %v1062, 0.75
      %v1095 = vmul.f32 %v1063, 0.75
      %v1096 = vmul.f32 %v1064, 0.75
      %v1097 = vmul.f32 %v1065, 0.75
      %v1098 = vmul.f32 %v1034, 0.25
      %v1099 = vmul.f32 %v1035, 0.25
      %v1100 = vmul.f32 %v1036, 0.25
      %v1101 = vmul.f32 %v1037, 0.25
      %v1102 = vmul.f32 %v1038, 0.25
      %v1103 = vmul.f32 %v1039, 0.25
      %v1104 = vmul.f32 %v1040, 0.25
      %v1105 = vmul.f32 %v1041, 0.25
      %v1106 = vmul.f32 %v1042, 0.25
      %v1107 = vmul.f32 %v1043, 0.25
      %v1108 = vmul.f32 %v1044, 0.25
      %v1109 = vmul.f32 %v1045, 0.25
      %v1110 = vmul.f32 %v1046, 0.25
      %v1111 = vmul.f32 %v1047, 0.25
      %v1112 = vmul.f32 %v1048, 0.25
      %v1113 = vmul.f32 %v1049, 0.25
      %v1114 = vmul.f32 %v1050, 0.25
      %v1115 = vmul.f32 %v1051, 0.25
      %v1116 = vmul.f32 %v1052, 0.25
      %v1117 = vmul.f32 %v1053, 0.25
      %v1118 = vmul.f32 %v1054, 0.25
      %v1119 = vmul.f32 %v1055, 0.25
      %v1120 = vmul.f32 %v1056, 0.25
      %v1121 = vmul.f32 %v1057, 0.25
      %v1122 = vmul.f32 %v1058, 0.25
      %v1123 = vmul.f32 %v1059, 0.25
      %v1124 = vmul.f32 %v1060, 0.25
      %v1125 = vmul.f32 %v1061, 0.25
      %v1126 = vmul.f32 %v1062, 0.25
      %v1127 = vmul.f32 %v1063, 0.25
      %v1128 = vadd.f32 %v1066, %v1098
      %v1129 = vadd.f32 %v1067, %v1099
      %v1130 = vadd.f32 %v1068, %v1098
      %v1131 = vadd.f32 %v1069, %v1099
      %v1132 = vadd.f32 %v1070, %v1100
      %v1133 = vadd.f32 %v1071, %v1101
      %v1134 = vadd.f32 %v1072, %v1102
      %v1135 = vadd.f32 %v1073, %v1103
      %v1136 = vadd.f32 %v1074, %v1104
      %v1137 = vadd.f32 %v1075, %v1105
      %v1138 = vadd.f32 %v1076, %v1106
      %v1139 = vadd.f32 %v1077, %v1107
      %v1140 = vadd.f32 %v1078, %v1108
      %v1141 = vadd.f32 %v1079, %v1109
      %v1142 = vadd.f32 %v1080, %v1110
      %v1143 = vadd.f32 %v1081, %v1111
      %v1144 = vadd.f32 %v1082, %v1112
      %v1145 = vadd.f32 %v1083, %v1113
      %v1146 = vadd.f32 %v1084, %v1114
      %v1147 = vadd.f32 %v1085, %v1115
      %v1148 = vadd.f32 %v1086, %v1116
      %v1149 = vadd.f32 %v1087, %v1117
      %v1150 = vadd.f32 %v1088, %v1118
      %v1151 = vadd.f32 %v1089, %v1119
      %v1152 = vadd.f32 %v1090, %v1120
      %v1153 = vadd.f32 %v1091, %v1121
      %v1154 = vadd.f32 %v1092, %v1122
      %v1155 = vadd.f32 %v1093, %v1123
      %v1156 = vadd.f32 %v1094, %v1124
      %v1157 = vadd.f32 %v1095, %v1125
      %v1158 = vadd.f32 %v1096, %v1126
      %v1159 = vadd.f32 %v1097, %v1127
      %v1160 = vmul.f32 %v1064, 0.25
      %v1161 = vmul.f32 %v1065, 0.25
      %v1162 = vadd.f32 %v1066, %v1100
      %v1163 = vadd.f32 %v1067, %v1101
      %v1164 = vadd.f32 %v1068, %v1102
      %v1165 = vadd.f32 %v1069, %v1103
      %v1166 = vadd.f32 %v1070, %v1104
      %v1167 = vadd.f32 %v1071, %v1105
      %v1168 = vadd.f32 %v1072, %v1106
      %v1169 = vadd.f32 %v1073, %v1107
      %v1170 = vadd.f32 %v1074, %v1108
      %v1171 = vadd.f32 %v1075, %v1109
      %v1172 = vadd.f32 %v1076, %v1110
      %v1173 = vadd.f32 %v1077, %v1111
      %v1174 = vadd.f32 %v1078, %v1112
      %v1175 = vadd.f32 %v1079, %v1113
      %v1176 = vadd.f32 %v1080, %v1114
      %v1177 = vadd.f32 %v1081, %v1115
      %v1178 = vadd.f32 %v1082, %v1116
      %v1179 = vadd.f32 %v1083, %v1117
      %v1180 = vadd.f32 %v1084, %v1118
      %v1181 = vadd.f32 %v1085, %v1119
      %v1182 = vadd.f32 %v1086, %v1120
      %v1183 = vadd.f32 %v1087, %v1121
      %v1184 = vadd.f32 %v1088, %v1122
      %v1185 = vadd.f32 %v1089, %v1123
      %v1186 = vadd.f32 %v1090, %v1124
      %v1187 = vadd.f32 %v1091, %v1125
      %v1188 = vadd.f32 %v1092, %v1126
      %v1189 = vadd.f32 %v1093, %v1127
      %v1190 = vadd.f32 %v1094, %v1160
      %v1191 = vadd.f32 %v1095, %v1161
      %v1192 = vadd.f32 %v1096, %v1160
      %v1193 = vadd.f32 %v1097, %v1161
      %vm1226 = vcmask 1040384
      %v1227 = vrot.slane %v1128, 7
      %v1228 = vrot.slane %v1129, 7
      %v1229 = vsel %vm1226, %v1227, %v1228
      %v1230 = vrot.slane %v1130, 7
      %v1231 = vrot.slane %v1131, 7
      %v1232 = vsel %vm1226, %v1230, %v1231
      %v1233 = vrot.slane %v1132, 7
      %v1234 = vrot.slane %v1133, 7
      %v1235 = vsel %vm1226, %v1233, %v1234
      %v1236 = vrot.slane %v1134, 7
      %v1237 = vrot.slane %v1135, 7
      %v1238 = vsel %vm1226, %v1236, %v1237
      %v1239 = vrot.slane %v1136, 7
      %v1240 = vrot.slane %v1137, 7
      %v1241 = vsel %vm1226, %v1239, %v1240
      %v1242 = vrot.slane %v1138, 7
      %v1243 = vrot.slane %v1139, 7
      %v1244 = vsel %vm1226, %v1242, %v1243
      %v1245 = vrot.slane %v1140, 7
      %v1246 = vrot.slane %v1141, 7
      %v1247 = vsel %vm1226, %v1245, %v1246
      %v1248 = vrot.slane %v1142, 7
      %v1249 = vrot.slane %v1143, 7
      %v1250 = vsel %vm1226, %v1248, %v1249
      %v1251 = vrot.slane %v1144, 7
      %v1252 = vrot.slane %v1145, 7
      %v1253 = vsel %vm1226, %v1251, %v1252
      %v1254 = vrot.slane %v1146, 7
      %v1255 = vrot.slane %v1147, 7
      %v1256 = vsel %vm1226, %v1254, %v1255
      %v1257 = vrot.slane %v1148, 7
      %v1258 = vrot.slane %v1149, 7
      %v1259 = vsel %vm1226, %v1257, %v1258
      %v1260 = vrot.slane %v1150, 7
      %v1261 = vrot.slane %v1151, 7
      %v1262 = vsel %vm1226, %v1260, %v1261
      %v1263 = vrot.slane %v1152, 7
      %v1264 = vrot.slane %v1153, 7
      %v1265 = vsel %vm1226, %v1263, %v1264
      %v1266 = vrot.slane %v1154, 7
      %v1267 = vrot.slane %v1155, 7
      %v1268 = vsel %vm1226, %v1266, %v1267
      %v1269 = vrot.slane %v1156, 7
      %v1270 = vrot.slane %v1157, 7
      %v1271 = vsel %vm1226, %v1269, %v1270
      %v1272 = vrot.slane %v1158, 7
      %v1273 = vrot.slane %v1159, 7
      %v1274 = vsel %vm1226, %v1272, %v1273
      %v1307 = vsel %vm1226, %v1128, %v1227
      %v1308 = vsel %vm1226, %v1130, %v1230
      %v1309 = vsel %vm1226, %v1132, %v1233
      %v1310 = vsel %vm1226, %v1134, %v1236
      %v1311 = vsel %vm1226, %v1136, %v1239
      %v1312 = vsel %vm1226, %v1138, %v1242
      %v1313 = vsel %vm1226, %v1140, %v1245
      %v1314 = vsel %vm1226, %v1142, %v1248
      %v1315 = vsel %vm1226, %v1144, %v1251
      %v1316 = vsel %vm1226, %v1146, %v1254
      %v1317 = vsel %vm1226, %v1148, %v1257
      %v1318 = vsel %vm1226, %v1150, %v1260
      %v1319 = vsel %vm1226, %v1152, %v1263
      %v1320 = vsel %vm1226, %v1154, %v1266
      %v1321 = vsel %vm1226, %v1156, %v1269
      %v1322 = vsel %vm1226, %v1158, %v1272
      %vm1323 = vcmask 1046528
      %v1324 = vrot.slane %v1128, 1
      %v1325 = vrot.slane %v1129, 1
      %v1326 = vsel %vm1323, %v1324, %v1325
      %v1327 = vrot.slane %v1130, 1
      %v1328 = vrot.slane %v1131, 1
      %v1329 = vsel %vm1323, %v1327, %v1328
      %v1330 = vrot.slane %v1132, 1
      %v1331 = vrot.slane %v1133, 1
      %v1332 = vsel %vm1323, %v1330, %v1331
      %v1333 = vrot.slane %v1134, 1
      %v1334 = vrot.slane %v1135, 1
      %v1335 = vsel %vm1323, %v1333, %v1334
      %v1336 = vrot.slane %v1136, 1
      %v1337 = vrot.slane %v1137, 1
      %v1338 = vsel %vm1323, %v1336, %v1337
      %v1339 = vrot.slane %v1138, 1
      %v1340 = vrot.slane %v1139, 1
      %v1341 = vsel %vm1323, %v1339, %v1340
      %v1342 = vrot.slane %v1140, 1
      %v1343 = vrot.slane %v1141, 1
      %v1344 = vsel %vm1323, %v1342, %v1343
      %v1345 = vrot.slane %v1142, 1
      %v1346 = vrot.slane %v1143, 1
      %v1347 = vsel %vm1323, %v1345, %v1346
      %v1348 = vrot.slane %v1144, 1
      %v1349 = vrot.slane %v1145, 1
      %v1350 = vsel %vm1323, %v1348, %v1349
      %v1351 = vrot.slane %v1146, 1
      %v1352 = vrot.slane %v1147, 1
      %v1353 = vsel %vm1323, %v1351, %v1352
      %v1354 = vrot.slane %v1148, 1
      %v1355 = vrot.slane %v1149, 1
      %v1356 = vsel %vm1323, %v1354, %v1355
      %v1357 = vrot.slane %v1150, 1
      %v1358 = vrot.slane %v1151, 1
      %v1359 = vsel %vm1323, %v1357, %v1358
      %v1360 = vrot.slane %v1152, 1
      %v1361 = vrot.slane %v1153, 1
      %v1362 = vsel %vm1323, %v1360, %v1361
      %v1363 = vrot.slane %v1154, 1
      %v1364 = vrot.slane %v1155, 1
      %v1365 = vsel %vm1323, %v1363, %v1364
      %v1366 = vrot.slane %v1156, 1
      %v1367 = vrot.slane %v1157, 1
      %v1368 = vsel %vm1323, %v1366, %v1367
      %v1369 = vrot.slane %v1158, 1
      %v1370 = vrot.slane %v1159, 1
      %v1371 = vsel %vm1323, %v1369, %v1370
      %v1404 = vsel %vm1323, %v1325, %v1129
      %v1405 = vsel %vm1323, %v1328, %v1131
      %v1406 = vsel %vm1323, %v1331, %v1133
      %v1407 = vsel %vm1323, %v1334, %v1135
      %v1408 = vsel %vm1323, %v1337, %v1137
      %v1409 = vsel %vm1323, %v1340, %v1139
      %v1410 = vsel %vm1323, %v1343, %v1141
      %v1411 = vsel %vm1323, %v1346, %v1143
      %v1412 = vsel %vm1323, %v1349, %v1145
      %v1413 = vsel %vm1323, %v1352, %v1147
      %v1414 = vsel %vm1323, %v1355, %v1149
      %v1415 = vsel %vm1323, %v1358, %v1151
      %v1416 = vsel %vm1323, %v1361, %v1153
      %v1417 = vsel %vm1323, %v1364, %v1155
      %v1418 = vsel %vm1323, %v1367, %v1157
      %v1419 = vsel %vm1323, %v1370, %v1159
      %v1420 = vmul.f32 %v1128, 0.75
      %v1421 = vmul.f32 %v1129, 0.75
      %v1422 = vmul.f32 %v1130, 0.75
      %v1423 = vmul.f32 %v1131, 0.75
      %v1424 = vmul.f32 %v1132, 0.75
      %v1425 = vmul.f32 %v1133, 0.75
      %v1426 = vmul.f32 %v1134, 0.75
      %v1427 = vmul.f32 %v1135, 0.75
      %v1428 = vmul.f32 %v1136, 0.75
      %v1429 = vmul.f32 %v1137, 0.75
      %v1430 = vmul.f32 %v1138, 0.75
      %v1431 = vmul.f32 %v1139, 0.75
      %v1432 = vmul.f32 %v1140, 0.75
      %v1433 = vmul.f32 %v1141, 0.75
      %v1434 = vmul.f32 %v1142, 0.75
      %v1435 = vmul.f32 %v1143, 0.75
      %v1436 = vmul.f32 %v1144, 0.75
      %v1437 = vmul.f32 %v1145, 0.75
      %v1438 = vmul.f32 %v1146, 0.75
      %v1439 = vmul.f32 %v1147, 0.75
      %v1440 = vmul.f32 %v1148, 0.75
      %v1441 = vmul.f32 %v1149, 0.75
      %v1442 = vmul.f32 %v1150, 0.75
      %v1443 = vmul.f32 %v1151, 0.75
      %v1444 = vmul.f32 %v1152, 0.75
      %v1445 = vmul.f32 %v1153, 0.75
      %v1446 = vmul.f32 %v1154, 0.75
      %v1447 = vmul.f32 %v1155, 0.75
      %v1448 = vmul.f32 %v1156, 0.75
      %v1449 = vmul.f32 %v1157, 0.75
      %v1450 = vmul.f32 %v1158, 0.75
      %v1451 = vmul.f32 %v1159, 0.75
      %v1452 = vmul.f32 %v1307, 0.25
      %v1453 = vmul.f32 %v1229, 0.25
      %v1454 = vmul.f32 %v1308, 0.25
      %v1455 = vmul.f32 %v1232, 0.25
      %v1456 = vmul.f32 %v1309, 0.25
      %v1457 = vmul.f32 %v1235, 0.25
      %v1458 = vmul.f32 %v1310, 0.25
      %v1459 = vmul.f32 %v1238, 0.25
      %v1460 = vmul.f32 %v1311, 0.25
      %v1461 = vmul.f32 %v1241, 0.25
      %v1462 = vmul.f32 %v1312, 0.25
      %v1463 = vmul.f32 %v1244, 0.25
      %v1464 = vmul.f32 %v1313, 0.25
      %v1465 = vmul.f32 %v1247, 0.25
      %v1466 = vmul.f32 %v1314, 0.25
      %v1467 = vmul.f32 %v1250, 0.25
      %v1468 = vmul.f32 %v1315, 0.25
      %v1469 = vmul.f32 %v1253, 0.25
      %v1470 = vmul.f32 %v1316, 0.25
      %v1471 = vmul.f32 %v1256, 0.25
      %v1472 = vmul.f32 %v1317, 0.25
      %v1473 = vmul.f32 %v1259, 0.25
      %v1474 = vmul.f32 %v1318, 0.25
      %v1475 = vmul.f32 %v1262, 0.25
      %v1476 = vmul.f32 %v1319, 0.25
      %v1477 = vmul.f32 %v1265, 0.25
      %v1478 = vmul.f32 %v1320, 0.25
      %v1479 = vmul.f32 %v1268, 0.25
      %v1480 = vmul.f32 %v1321, 0.25
      %v1481 = vmul.f32 %v1271, 0.25
      %v1482 = vmul.f32 %v1322, 0.25
      %v1483 = vmul.f32 %v1274, 0.25
      %v1484 = vadd.f32 %v1420, %v1452
      %v1485 = vadd.f32 %v1421, %v1453
      %v1486 = vadd.f32 %v1422, %v1454
      %v1487 = vadd.f32 %v1423, %v1455
      %v1488 = vadd.f32 %v1424, %v1456
      %v1489 = vadd.f32 %v1425, %v1457
      %v1490 = vadd.f32 %v1426, %v1458
      %v1491 = vadd.f32 %v1427, %v1459
      %v1492 = vadd.f32 %v1428, %v1460
      %v1493 = vadd.f32 %v1429, %v1461
      %v1494 = vadd.f32 %v1430, %v1462
      %v1495 = vadd.f32 %v1431, %v1463
      %v1496 = vadd.f32 %v1432, %v1464
      %v1497 = vadd.f32 %v1433, %v1465
      %v1498 = vadd.f32 %v1434, %v1466
      %v1499 = vadd.f32 %v1435, %v1467
      %v1500 = vadd.f32 %v1436, %v1468
      %v1501 = vadd.f32 %v1437, %v1469
      %v1502 = vadd.f32 %v1438, %v1470
      %v1503 = vadd.f32 %v1439, %v1471
      %v1504 = vadd.f32 %v1440, %v1472
      %v1505 = vadd.f32 %v1441, %v1473
      %v1506 = vadd.f32 %v1442, %v1474
      %v1507 = vadd.f32 %v1443, %v1475
      %v1508 = vadd.f32 %v1444, %v1476
      %v1509 = vadd.f32 %v1445, %v1477
      %v1510 = vadd.f32 %v1446, %v1478
      %v1511 = vadd.f32 %v1447, %v1479
      %v1512 = vadd.f32 %v1448, %v1480
      %v1513 = vadd.f32 %v1449, %v1481
      %v1514 = vadd.f32 %v1450, %v1482
      %v1515 = vadd.f32 %v1451, %v1483
      %v1516 = vmul.f32 %v1326, 0.25
      %v1517 = vmul.f32 %v1404, 0.25
      %v1518 = vmul.f32 %v1329, 0.25
      %v1519 = vmul.f32 %v1405, 0.25
      %v1520 = vmul.f32 %v1332, 0.25
      %v1521 = vmul.f32 %v1406, 0.25
      %v1522 = vmul.f32 %v1335, 0.25
      %v1523 = vmul.f32 %v1407, 0.25
      %v1524 = vmul.f32 %v1338, 0.25
      %v1525 = vmul.f32 %v1408, 0.25
      %v1526 = vmul.f32 %v1341, 0.25
      %v1527 = vmul.f32 %v1409, 0.25
      %v1528 = vmul.f32 %v1344, 0.25
      %v1529 = vmul.f32 %v1410, 0.25
      %v1530 = vmul.f32 %v1347, 0.25
      %v1531 = vmul.f32 %v1411, 0.25
      %v1532 = vmul.f32 %v1350, 0.25
      %v1533 = vmul.f32 %v1412, 0.25
      %v1534 = vmul.f32 %v1353, 0.25
      %v1535 = vmul.f32 %v1413, 0.25
      %v1536 = vmul.f32 %v1356, 0.25
      %v1537 = vmul.f32 %v1414, 0.25
      %v1538 = vmul.f32 %v1359, 0.25
      %v1539 = vmul.f32 %v1415, 0.25
      %v1540 = vmul.f32 %v1362, 0.25
      %v1541 = vmul.f32 %v1416, 0.25
      %v1542 = vmul.f32 %v1365, 0.25
      %v1543 = vmul.f32 %v1417, 0.25
      %v1544 = vmul.f32 %v1368, 0.25
      %v1545 = vmul.f32 %v1418, 0.25
      %v1546 = vmul.f32 %v1371, 0.25
      %v1547 = vmul.f32 %v1419, 0.25
      %v1548 = vadd.f32 %v1420, %v1516
      %v1549 = vadd.f32 %v1421, %v1517
      %v1550 = vadd.f32 %v1422, %v1518
      %v1551 = vadd.f32 %v1423, %v1519
      %v1552 = vadd.f32 %v1424, %v1520
      %v1553 = vadd.f32 %v1425, %v1521
      %v1554 = vadd.f32 %v1426, %v1522
      %v1555 = vadd.f32 %v1427, %v1523
      %v1556 = vadd.f32 %v1428, %v1524
      %v1557 = vadd.f32 %v1429, %v1525
      %v1558 = vadd.f32 %v1430, %v1526
      %v1559 = vadd.f32 %v1431, %v1527
      %v1560 = vadd.f32 %v1432, %v1528
      %v1561 = vadd.f32 %v1433, %v1529
      %v1562 = vadd.f32 %v1434, %v1530
      %v1563 = vadd.f32 %v1435, %v1531
      %v1564 = vadd.f32 %v1436, %v1532
      %v1565 = vadd.f32 %v1437, %v1533
      %v1566 = vadd.f32 %v1438, %v1534
      %v1567 = vadd.f32 %v1439, %v1535
      %v1568 = vadd.f32 %v1440, %v1536
      %v1569 = vadd.f32 %v1441, %v1537
      %v1570 = vadd.f32 %v1442, %v1538
      %v1571 = vadd.f32 %v1443, %v1539
      %v1572 = vadd.f32 %v1444, %v1540
      %v1573 = vadd.f32 %v1445, %v1541
      %v1574 = vadd.f32 %v1446, %v1542
      %v1575 = vadd.f32 %v1447, %v1543
      %v1576 = vadd.f32 %v1448, %v1544
      %v1577 = vadd.f32 %v1449, %v1545
      %v1578 = vadd.f32 %v1450, %v1546
      %v1579 = vadd.f32 %v1451, %v1547
      %v1612 = vrot.slane %v1162, 7
      %v1613 = vrot.slane %v1163, 7
      %v1614 = vsel %vm1226, %v1612, %v1613
      %v1615 = vrot.slane %v1164, 7
      %v1616 = vrot.slane %v1165, 7
      %v1617 = vsel %vm1226, %v1615, %v1616
      %v1618 = vrot.slane %v1166, 7
      %v1619 = vrot.slane %v1167, 7
      %v1620 = vsel %vm1226, %v1618, %v1619
      %v1621 = vrot.slane %v1168, 7
      %v1622 = vrot.slane %v1169, 7
      %v1623 = vsel %vm1226, %v1621, %v1622
      %v1624 = vrot.slane %v1170, 7
      %v1625 = vrot.slane %v1171, 7
      %v1626 = vsel %vm1226, %v1624, %v1625
      %v1627 = vrot.slane %v1172, 7
      %v1628 = vrot.slane %v1173, 7
      %v1629 = vsel %vm1226, %v1627, %v1628
      %v1630 = vrot.slane %v1174, 7
      %v1631 = vrot.slane %v1175, 7
      %v1632 = vsel %vm1226, %v1630, %v1631
      %v1633 = vrot.slane %v1176, 7
      %v1634 = vrot.slane %v1177, 7
      %v1635 = vsel %vm1226, %v1633, %v1634
      %v1636 = vrot.slane %v1178, 7
      %v1637 = vrot.slane %v1179, 7
      %v1638 = vsel %vm1226, %v1636, %v1637
      %v1639 = vrot.slane %v1180, 7
      %v1640 = vrot.slane %v1181, 7
      %v1641 = vsel %vm1226, %v1639, %v1640
      %v1642 = vrot.slane %v1182, 7
      %v1643 = vrot.slane %v1183, 7
      %v1644 = vsel %vm1226, %v1642, %v1643
      %v1645 = vrot.slane %v1184, 7
      %v1646 = vrot.slane %v1185, 7
      %v1647 = vsel %vm1226, %v1645, %v1646
      %v1648 = vrot.slane %v1186, 7
      %v1649 = vrot.slane %v1187, 7
      %v1650 = vsel %vm1226, %v1648, %v1649
      %v1651 = vrot.slane %v1188, 7
      %v1652 = vrot.slane %v1189, 7
      %v1653 = vsel %vm1226, %v1651, %v1652
      %v1654 = vrot.slane %v1190, 7
      %v1655 = vrot.slane %v1191, 7
      %v1656 = vsel %vm1226, %v1654, %v1655
      %v1657 = vrot.slane %v1192, 7
      %v1658 = vrot.slane %v1193, 7
      %v1659 = vsel %vm1226, %v1657, %v1658
      %v1692 = vsel %vm1226, %v1162, %v1612
      %v1693 = vsel %vm1226, %v1164, %v1615
      %v1694 = vsel %vm1226, %v1166, %v1618
      %v1695 = vsel %vm1226, %v1168, %v1621
      %v1696 = vsel %vm1226, %v1170, %v1624
      %v1697 = vsel %vm1226, %v1172, %v1627
      %v1698 = vsel %vm1226, %v1174, %v1630
      %v1699 = vsel %vm1226, %v1176, %v1633
      %v1700 = vsel %vm1226, %v1178, %v1636
      %v1701 = vsel %vm1226, %v1180, %v1639
      %v1702 = vsel %vm1226, %v1182, %v1642
      %v1703 = vsel %vm1226, %v1184, %v1645
      %v1704 = vsel %vm1226, %v1186, %v1648
      %v1705 = vsel %vm1226, %v1188, %v1651
      %v1706 = vsel %vm1226, %v1190, %v1654
      %v1707 = vsel %vm1226, %v1192, %v1657
      %v1708 = vrot.slane %v1162, 1
      %v1709 = vrot.slane %v1163, 1
      %v1710 = vsel %vm1323, %v1708, %v1709
      %v1711 = vrot.slane %v1164, 1
      %v1712 = vrot.slane %v1165, 1
      %v1713 = vsel %vm1323, %v1711, %v1712
      %v1714 = vrot.slane %v1166, 1
      %v1715 = vrot.slane %v1167, 1
      %v1716 = vsel %vm1323, %v1714, %v1715
      %v1717 = vrot.slane %v1168, 1
      %v1718 = vrot.slane %v1169, 1
      %v1719 = vsel %vm1323, %v1717, %v1718
      %v1720 = vrot.slane %v1170, 1
      %v1721 = vrot.slane %v1171, 1
      %v1722 = vsel %vm1323, %v1720, %v1721
      %v1723 = vrot.slane %v1172, 1
      %v1724 = vrot.slane %v1173, 1
      %v1725 = vsel %vm1323, %v1723, %v1724
      %v1726 = vrot.slane %v1174, 1
      %v1727 = vrot.slane %v1175, 1
      %v1728 = vsel %vm1323, %v1726, %v1727
      %v1729 = vrot.slane %v1176, 1
      %v1730 = vrot.slane %v1177, 1
      %v1731 = vsel %vm1323, %v1729, %v1730
      %v1732 = vrot.slane %v1178, 1
      %v1733 = vrot.slane %v1179, 1
      %v1734 = vsel %vm1323, %v1732, %v1733
      %v1735 = vrot.slane %v1180, 1
      %v1736 = vrot.slane %v1181, 1
      %v1737 = vsel %vm1323, %v1735, %v1736
      %v1738 = vrot.slane %v1182, 1
      %v1739 = vrot.slane %v1183, 1
      %v1740 = vsel %vm1323, %v1738, %v1739
      %v1741 = vrot.slane %v1184, 1
      %v1742 = vrot.slane %v1185, 1
      %v1743 = vsel %vm1323, %v1741, %v1742
      %v1744 = vrot.slane %v1186, 1
      %v1745 = vrot.slane %v1187, 1
      %v1746 = vsel %vm1323, %v1744, %v1745
      %v1747 = vrot.slane %v1188, 1
      %v1748 = vrot.slane %v1189, 1
      %v1749 = vsel %vm1323, %v1747, %v1748
      %v1750 = vrot.slane %v1190, 1
      %v1751 = vrot.slane %v1191, 1
      %v1752 = vsel %vm1323, %v1750, %v1751
      %v1753 = vrot.slane %v1192, 1
      %v1754 = vrot.slane %v1193, 1
      %v1755 = vsel %vm1323, %v1753, %v1754
      %v1788 = vsel %vm1323, %v1709, %v1163
      %v1789 = vsel %vm1323, %v1712, %v1165
      %v1790 = vsel %vm1323, %v1715, %v1167
      %v1791 = vsel %vm1323, %v1718, %v1169
      %v1792 = vsel %vm1323, %v1721, %v1171
      %v1793 = vsel %vm1323, %v1724, %v1173
      %v1794 = vsel %vm1323, %v1727, %v1175
      %v1795 = vsel %vm1323, %v1730, %v1177
      %v1796 = vsel %vm1323, %v1733, %v1179
      %v1797 = vsel %vm1323, %v1736, %v1181
      %v1798 = vsel %vm1323, %v1739, %v1183
      %v1799 = vsel %vm1323, %v1742, %v1185
      %v1800 = vsel %vm1323, %v1745, %v1187
      %v1801 = vsel %vm1323, %v1748, %v1189
      %v1802 = vsel %vm1323, %v1751, %v1191
      %v1803 = vsel %vm1323, %v1754, %v1193
      %v1804 = vmul.f32 %v1162, 0.75
      %v1805 = vmul.f32 %v1163, 0.75
      %v1806 = vmul.f32 %v1164, 0.75
      %v1807 = vmul.f32 %v1165, 0.75
      %v1808 = vmul.f32 %v1166, 0.75
      %v1809 = vmul.f32 %v1167, 0.75
      %v1810 = vmul.f32 %v1168, 0.75
      %v1811 = vmul.f32 %v1169, 0.75
      %v1812 = vmul.f32 %v1170, 0.75
      %v1813 = vmul.f32 %v1171, 0.75
      %v1814 = vmul.f32 %v1172, 0.75
      %v1815 = vmul.f32 %v1173, 0.75
      %v1816 = vmul.f32 %v1174, 0.75
      %v1817 = vmul.f32 %v1175, 0.75
      %v1818 = vmul.f32 %v1176, 0.75
      %v1819 = vmul.f32 %v1177, 0.75
      %v1820 = vmul.f32 %v1178, 0.75
      %v1821 = vmul.f32 %v1179, 0.75
      %v1822 = vmul.f32 %v1180, 0.75
      %v1823 = vmul.f32 %v1181, 0.75
      %v1824 = vmul.f32 %v1182, 0.75
      %v1825 = vmul.f32 %v1183, 0.75
      %v1826 = vmul.f32 %v1184, 0.75
      %v1827 = vmul.f32 %v1185, 0.75
      %v1828 = vmul.f32 %v1186, 0.75
      %v1829 = vmul.f32 %v1187, 0.75
      %v1830 = vmul.f32 %v1188, 0.75
      %v1831 = vmul.f32 %v1189, 0.75
      %v1832 = vmul.f32 %v1190, 0.75
      %v1833 = vmul.f32 %v1191, 0.75
      %v1834 = vmul.f32 %v1192, 0.75
      %v1835 = vmul.f32 %v1193, 0.75
      %v1836 = vmul.f32 %v1692, 0.25
      %v1837 = vmul.f32 %v1614, 0.25
      %v1838 = vmul.f32 %v1693, 0.25
      %v1839 = vmul.f32 %v1617, 0.25
      %v1840 = vmul.f32 %v1694, 0.25
      %v1841 = vmul.f32 %v1620, 0.25
      %v1842 = vmul.f32 %v1695, 0.25
      %v1843 = vmul.f32 %v1623, 0.25
      %v1844 = vmul.f32 %v1696, 0.25
      %v1845 = vmul.f32 %v1626, 0.25
      %v1846 = vmul.f32 %v1697, 0.25
      %v1847 = vmul.f32 %v1629, 0.25
      %v1848 = vmul.f32 %v1698, 0.25
      %v1849 = vmul.f32 %v1632, 0.25
      %v1850 = vmul.f32 %v1699, 0.25
      %v1851 = vmul.f32 %v1635, 0.25
      %v1852 = vmul.f32 %v1700, 0.25
      %v1853 = vmul.f32 %v1638, 0.25
      %v1854 = vmul.f32 %v1701, 0.25
      %v1855 = vmul.f32 %v1641, 0.25
      %v1856 = vmul.f32 %v1702, 0.25
      %v1857 = vmul.f32 %v1644, 0.25
      %v1858 = vmul.f32 %v1703, 0.25
      %v1859 = vmul.f32 %v1647, 0.25
      %v1860 = vmul.f32 %v1704, 0.25
      %v1861 = vmul.f32 %v1650, 0.25
      %v1862 = vmul.f32 %v1705, 0.25
      %v1863 = vmul.f32 %v1653, 0.25
      %v1864 = vmul.f32 %v1706, 0.25
      %v1865 = vmul.f32 %v1656, 0.25
      %v1866 = vmul.f32 %v1707, 0.25
      %v1867 = vmul.f32 %v1659, 0.25
      %v1868 = vadd.f32 %v1804, %v1836
      %v1869 = vadd.f32 %v1805, %v1837
      %v1870 = vadd.f32 %v1806, %v1838
      %v1871 = vadd.f32 %v1807, %v1839
      %v1872 = vadd.f32 %v1808, %v1840
      %v1873 = vadd.f32 %v1809, %v1841
      %v1874 = vadd.f32 %v1810, %v1842
      %v1875 = vadd.f32 %v1811, %v1843
      %v1876 = vadd.f32 %v1812, %v1844
      %v1877 = vadd.f32 %v1813, %v1845
      %v1878 = vadd.f32 %v1814, %v1846
      %v1879 = vadd.f32 %v1815, %v1847
      %v1880 = vadd.f32 %v1816, %v1848
      %v1881 = vadd.f32 %v1817, %v1849
      %v1882 = vadd.f32 %v1818, %v1850
      %v1883 = vadd.f32 %v1819, %v1851
      %v1884 = vadd.f32 %v1820, %v1852
      %v1885 = vadd.f32 %v1821, %v1853
      %v1886 = vadd.f32 %v1822, %v1854
      %v1887 = vadd.f32 %v1823, %v1855
      %v1888 = vadd.f32 %v1824, %v1856
      %v1889 = vadd.f32 %v1825, %v1857
      %v1890 = vadd.f32 %v1826, %v1858
      %v1891 = vadd.f32 %v1827, %v1859
      %v1892 = vadd.f32 %v1828, %v1860
      %v1893 = vadd.f32 %v1829, %v1861
      %v1894 = vadd.f32 %v1830, %v1862
      %v1895 = vadd.f32 %v1831, %v1863
      %v1896 = vadd.f32 %v1832, %v1864
      %v1897 = vadd.f32 %v1833, %v1865
      %v1898 = vadd.f32 %v1834, %v1866
      %v1899 = vadd.f32 %v1835, %v1867
      %v1900 = vmul.f32 %v1710, 0.25
      %v1901 = vmul.f32 %v1788, 0.25
      %v1902 = vmul.f32 %v1713, 0.25
      %v1903 = vmul.f32 %v1789, 0.25
      %v1904 = vmul.f32 %v1716, 0.25
      %v1905 = vmul.f32 %v1790, 0.25
      %v1906 = vmul.f32 %v1719, 0.25
      %v1907 = vmul.f32 %v1791, 0.25
      %v1908 = vmul.f32 %v1722, 0.25
      %v1909 = vmul.f32 %v1792, 0.25
      %v1910 = vmul.f32 %v1725, 0.25
      %v1911 = vmul.f32 %v1793, 0.25
      %v1912 = vmul.f32 %v1728, 0.25
      %v1913 = vmul.f32 %v1794, 0.25
      %v1914 = vmul.f32 %v1731, 0.25
      %v1915 = vmul.f32 %v1795, 0.25
      %v1916 = vmul.f32 %v1734, 0.25
      %v1917 = vmul.f32 %v1796, 0.25
      %v1918 = vmul.f32 %v1737, 0.25
      %v1919 = vmul.f32 %v1797, 0.25
      %v1920 = vmul.f32 %v1740, 0.25
      %v1921 = vmul.f32 %v1798, 0.25
      %v1922 = vmul.f32 %v1743, 0.25
      %v1923 = vmul.f32 %v1799, 0.25
      %v1924 = vmul.f32 %v1746, 0.25
      %v1925 = vmul.f32 %v1800, 0.25
      %v1926 = vmul.f32 %v1749, 0.25
      %v1927 = vmul.f32 %v1801, 0.25
      %v1928 = vmul.f32 %v1752, 0.25
      %v1929 = vmul.f32 %v1802, 0.25
      %v1930 = vmul.f32 %v1755, 0.25
      %v1931 = vmul.f32 %v1803, 0.25
      %v1932 = vadd.f32 %v1804, %v1900
      %v1933 = vadd.f32 %v1805, %v1901
      %v1934 = vadd.f32 %v1806, %v1902
      %v1935 = vadd.f32 %v1807, %v1903
      %v1936 = vadd.f32 %v1808, %v1904
      %v1937 = vadd.f32 %v1809, %v1905
      %v1938 = vadd.f32 %v1810, %v1906
      %v1939 = vadd.f32 %v1811, %v1907
      %v1940 = vadd.f32 %v1812, %v1908
      %v1941 = vadd.f32 %v1813, %v1909
      %v1942 = vadd.f32 %v1814, %v1910
      %v1943 = vadd.f32 %v1815, %v1911
      %v1944 = vadd.f32 %v1816, %v1912
      %v1945 = vadd.f32 %v1817, %v1913
      %v1946 = vadd.f32 %v1818, %v1914
      %v1947 = vadd.f32 %v1819, %v1915
      %v1948 = vadd.f32 %v1820, %v1916
      %v1949 = vadd.f32 %v1821, %v1917
      %v1950 = vadd.f32 %v1822, %v1918
      %v1951 = vadd.f32 %v1823, %v1919
      %v1952 = vadd.f32 %v1824, %v1920
      %v1953 = vadd.f32 %v1825, %v1921
      %v1954 = vadd.f32 %v1826, %v1922
      %v1955 = vadd.f32 %v1827, %v1923
      %v1956 = vadd.f32 %v1828, %v1924
      %v1957 = vadd.f32 %v1829, %v1925
      %v1958 = vadd.f32 %v1830, %v1926
      %v1959 = vadd.f32 %v1831, %v1927
      %v1960 = vadd.f32 %v1832, %v1928
      %v1961 = vadd.f32 %v1833, %v1929
      %v1962 = vadd.f32 %v1834, %v1930
      %v1963 = vadd.f32 %v1835, %v1931
      %vm1964 = vcmask 64512
      %1965 = vst.msk [vmem:[%s380] sm:$0xff] %vm1964, %v1484
      %1966 = vst.msk [vmem:[%s380 + $0x8] sm:$0xff] %vm1964, %v1485
      %1967 = vst.msk [vmem:[%s380 + $0x10] sm:$0xff] %vm1964, %v1486
      %1968 = vst.msk [vmem:[%s380 + $0x18] sm:$0xff] %vm1964, %v1487
      %1969 = vst.msk [vmem:[%s380 + $0x20] sm:$0xff] %vm1964, %v1488
      %1970 = vst.msk [vmem:[%s380 + $0x28] sm:$0xff] %vm1964, %v1489
      %1971 = vst.msk [vmem:[%s380 + $0x30] sm:$0xff] %vm1964, %v1490
      %1972 = vst.msk [vmem:[%s380 + $0x38] sm:$0xff] %vm1964, %v1491
      %1973 = vst.msk [vmem:[%s380 + $0x40] sm:$0xff] %vm1964, %v1492
      %1974 = vst.msk [vmem:[%s380 + $0x48] sm:$0xff] %vm1964, %v1493
      %1975 = vst.msk [vmem:[%s380 + $0x50] sm:$0xff] %vm1964, %v1494
      %1976 = vst.msk [vmem:[%s380 + $0x58] sm:$0xff] %vm1964, %v1495
      %1977 = vst.msk [vmem:[%s380 + $0x60] sm:$0xff] %vm1964, %v1496
      %1978 = vst.msk [vmem:[%s380 + $0x68] sm:$0xff] %vm1964, %v1497
      %1979 = vst.msk [vmem:[%s380 + $0x70] sm:$0xff] %vm1964, %v1498
      %1980 = vst.msk [vmem:[%s380 + $0x78] sm:$0xff] %vm1964, %v1499
      %1981 = vst.msk [vmem:[%s380 + $0x80] sm:$0xff] %vm1964, %v1500
      %1982 = vst.msk [vmem:[%s380 + $0x88] sm:$0xff] %vm1964, %v1501
      %1983 = vst.msk [vmem:[%s380 + $0x90] sm:$0xff] %vm1964, %v1502
      %1984 = vst.msk [vmem:[%s380 + $0x98] sm:$0xff] %vm1964, %v1503
      %1985 = vst.msk [vmem:[%s380 + $0xa0] sm:$0xff] %vm1964, %v1504
      %1986 = vst.msk [vmem:[%s380 + $0xa8] sm:$0xff] %vm1964, %v1505
      %1987 = vst.msk [vmem:[%s380 + $0xb0] sm:$0xff] %vm1964, %v1506
      %1988 = vst.msk [vmem:[%s380 + $0xb8] sm:$0xff] %vm1964, %v1507
      %1989 = vst.msk [vmem:[%s380 + $0xc0] sm:$0xff] %vm1964, %v1508
      %1990 = vst.msk [vmem:[%s380 + $0xc8] sm:$0xff] %vm1964, %v1509
      %1991 = vst.msk [vmem:[%s380 + $0xd0] sm:$0xff] %vm1964, %v1510
      %1992 = vst.msk [vmem:[%s380 + $0xd8] sm:$0xff] %vm1964, %v1511
      %1993 = vst.msk [vmem:[%s380 + $0xe0] sm:$0xff] %vm1964, %v1512
      %1994 = vst.msk [vmem:[%s380 + $0xe8] sm:$0xff] %vm1964, %v1513
      %1995 = vst.msk [vmem:[%s380 + $0xf0] sm:$0xff] %vm1964, %v1514
      %1996 = vst.msk [vmem:[%s380 + $0xf8] sm:$0xff] %vm1964, %v1515
      %1997 = vst.msk [vmem:[%s388] sm:$0xff] %vm1964, %v1548
      %1998 = vst.msk [vmem:[%s388 + $0x8] sm:$0xff] %vm1964, %v1549
      %1999 = vst.msk [vmem:[%s388 + $0x10] sm:$0xff] %vm1964, %v1550
      %2000 = vst.msk [vmem:[%s388 + $0x18] sm:$0xff] %vm1964, %v1551
      %2001 = vst.msk [vmem:[%s388 + $0x20] sm:$0xff] %vm1964, %v1552
      %2002 = vst.msk [vmem:[%s388 + $0x28] sm:$0xff] %vm1964, %v1553
      %2003 = vst.msk [vmem:[%s388 + $0x30] sm:$0xff] %vm1964, %v1554
      %2004 = vst.msk [vmem:[%s388 + $0x38] sm:$0xff] %vm1964, %v1555
      %2005 = vst.msk [vmem:[%s388 + $0x40] sm:$0xff] %vm1964, %v1556
      %2006 = vst.msk [vmem:[%s388 + $0x48] sm:$0xff] %vm1964, %v1557
      %2007 = vst.msk [vmem:[%s388 + $0x50] sm:$0xff] %vm1964, %v1558
      %2008 = vst.msk [vmem:[%s388 + $0x58] sm:$0xff] %vm1964, %v1559
      %2009 = vst.msk [vmem:[%s388 + $0x60] sm:$0xff] %vm1964, %v1560
      %2010 = vst.msk [vmem:[%s388 + $0x68] sm:$0xff] %vm1964, %v1561
      %2011 = vst.msk [vmem:[%s388 + $0x70] sm:$0xff] %vm1964, %v1562
      %2012 = vst.msk [vmem:[%s388 + $0x78] sm:$0xff] %vm1964, %v1563
      %2013 = vst.msk [vmem:[%s388 + $0x80] sm:$0xff] %vm1964, %v1564
      %2014 = vst.msk [vmem:[%s388 + $0x88] sm:$0xff] %vm1964, %v1565
      %2015 = vst.msk [vmem:[%s388 + $0x90] sm:$0xff] %vm1964, %v1566
      %2016 = vst.msk [vmem:[%s388 + $0x98] sm:$0xff] %vm1964, %v1567
      %2017 = vst.msk [vmem:[%s388 + $0xa0] sm:$0xff] %vm1964, %v1568
      %2018 = vst.msk [vmem:[%s388 + $0xa8] sm:$0xff] %vm1964, %v1569
      %2019 = vst.msk [vmem:[%s388 + $0xb0] sm:$0xff] %vm1964, %v1570
      %2020 = vst.msk [vmem:[%s388 + $0xb8] sm:$0xff] %vm1964, %v1571
      %2021 = vst.msk [vmem:[%s388 + $0xc0] sm:$0xff] %vm1964, %v1572
      %2022 = vst.msk [vmem:[%s388 + $0xc8] sm:$0xff] %vm1964, %v1573
      %2023 = vst.msk [vmem:[%s388 + $0xd0] sm:$0xff] %vm1964, %v1574
      %2024 = vst.msk [vmem:[%s388 + $0xd8] sm:$0xff] %vm1964, %v1575
      %2025 = vst.msk [vmem:[%s388 + $0xe0] sm:$0xff] %vm1964, %v1576
      %2026 = vst.msk [vmem:[%s388 + $0xe8] sm:$0xff] %vm1964, %v1577
      %2027 = vst.msk [vmem:[%s388 + $0xf0] sm:$0xff] %vm1964, %v1578
      %2028 = vst.msk [vmem:[%s388 + $0xf8] sm:$0xff] %vm1964, %v1579
      %2029 = vst.msk [vmem:[%s396] sm:$0xff] %vm1964, %v1868
      %2030 = vst.msk [vmem:[%s396 + $0x8] sm:$0xff] %vm1964, %v1869
      %2031 = vst.msk [vmem:[%s396 + $0x10] sm:$0xff] %vm1964, %v1870
      %2032 = vst.msk [vmem:[%s396 + $0x18] sm:$0xff] %vm1964, %v1871
      %2033 = vst.msk [vmem:[%s396 + $0x20] sm:$0xff] %vm1964, %v1872
      %2034 = vst.msk [vmem:[%s396 + $0x28] sm:$0xff] %vm1964, %v1873
      %2035 = vst.msk [vmem:[%s396 + $0x30] sm:$0xff] %vm1964, %v1874
      %2036 = vst.msk [vmem:[%s396 + $0x38] sm:$0xff] %vm1964, %v1875
      %2037 = vst.msk [vmem:[%s396 + $0x40] sm:$0xff] %vm1964, %v1876
      %2038 = vst.msk [vmem:[%s396 + $0x48] sm:$0xff] %vm1964, %v1877
      %2039 = vst.msk [vmem:[%s396 + $0x50] sm:$0xff] %vm1964, %v1878
      %2040 = vst.msk [vmem:[%s396 + $0x58] sm:$0xff] %vm1964, %v1879
      %2041 = vst.msk [vmem:[%s396 + $0x60] sm:$0xff] %vm1964, %v1880
      %2042 = vst.msk [vmem:[%s396 + $0x68] sm:$0xff] %vm1964, %v1881
      %2043 = vst.msk [vmem:[%s396 + $0x70] sm:$0xff] %vm1964, %v1882
      %2044 = vst.msk [vmem:[%s396 + $0x78] sm:$0xff] %vm1964, %v1883
      %2045 = vst.msk [vmem:[%s396 + $0x80] sm:$0xff] %vm1964, %v1884
      %2046 = vst.msk [vmem:[%s396 + $0x88] sm:$0xff] %vm1964, %v1885
      %2047 = vst.msk [vmem:[%s396 + $0x90] sm:$0xff] %vm1964, %v1886
      %2048 = vst.msk [vmem:[%s396 + $0x98] sm:$0xff] %vm1964, %v1887
      %2049 = vst.msk [vmem:[%s396 + $0xa0] sm:$0xff] %vm1964, %v1888
      %2050 = vst.msk [vmem:[%s396 + $0xa8] sm:$0xff] %vm1964, %v1889
      %2051 = vst.msk [vmem:[%s396 + $0xb0] sm:$0xff] %vm1964, %v1890
      %2052 = vst.msk [vmem:[%s396 + $0xb8] sm:$0xff] %vm1964, %v1891
      %2053 = vst.msk [vmem:[%s396 + $0xc0] sm:$0xff] %vm1964, %v1892
      %2054 = vst.msk [vmem:[%s396 + $0xc8] sm:$0xff] %vm1964, %v1893
      %2055 = vst.msk [vmem:[%s396 + $0xd0] sm:$0xff] %vm1964, %v1894
      %2056 = vst.msk [vmem:[%s396 + $0xd8] sm:$0xff] %vm1964, %v1895
      %2057 = vst.msk [vmem:[%s396 + $0xe0] sm:$0xff] %vm1964, %v1896
      %2058 = vst.msk [vmem:[%s396 + $0xe8] sm:$0xff] %vm1964, %v1897
      %2059 = vst.msk [vmem:[%s396 + $0xf0] sm:$0xff] %vm1964, %v1898
      %2060 = vst.msk [vmem:[%s396 + $0xf8] sm:$0xff] %vm1964, %v1899
      %2061 = vst.msk [vmem:[%s404] sm:$0xff] %vm1964, %v1932
      %2062 = vst.msk [vmem:[%s404 + $0x8] sm:$0xff] %vm1964, %v1933
      %2063 = vst.msk [vmem:[%s404 + $0x10] sm:$0xff] %vm1964, %v1934
      %2064 = vst.msk [vmem:[%s404 + $0x18] sm:$0xff] %vm1964, %v1935
      %2065 = vst.msk [vmem:[%s404 + $0x20] sm:$0xff] %vm1964, %v1936
      %2066 = vst.msk [vmem:[%s404 + $0x28] sm:$0xff] %vm1964, %v1937
      %2067 = vst.msk [vmem:[%s404 + $0x30] sm:$0xff] %vm1964, %v1938
      %2068 = vst.msk [vmem:[%s404 + $0x38] sm:$0xff] %vm1964, %v1939
      %2069 = vst.msk [vmem:[%s404 + $0x40] sm:$0xff] %vm1964, %v1940
      %2070 = vst.msk [vmem:[%s404 + $0x48] sm:$0xff] %vm1964, %v1941
      %2071 = vst.msk [vmem:[%s404 + $0x50] sm:$0xff] %vm1964, %v1942
      %2072 = vst.msk [vmem:[%s404 + $0x58] sm:$0xff] %vm1964, %v1943
      %2073 = vst.msk [vmem:[%s404 + $0x60] sm:$0xff] %vm1964, %v1944
      %2074 = vst.msk [vmem:[%s404 + $0x68] sm:$0xff] %vm1964, %v1945
      %2075 = vst.msk [vmem:[%s404 + $0x70] sm:$0xff] %vm1964, %v1946
      %2076 = vst.msk [vmem:[%s404 + $0x78] sm:$0xff] %vm1964, %v1947
      %2077 = vst.msk [vmem:[%s404 + $0x80] sm:$0xff] %vm1964, %v1948
      %2078 = vst.msk [vmem:[%s404 + $0x88] sm:$0xff] %vm1964, %v1949
      %2079 = vst.msk [vmem:[%s404 + $0x90] sm:$0xff] %vm1964, %v1950
      %2080 = vst.msk [vmem:[%s404 + $0x98] sm:$0xff] %vm1964, %v1951
      %2081 = vst.msk [vmem:[%s404 + $0xa0] sm:$0xff] %vm1964, %v1952
      %2082 = vst.msk [vmem:[%s404 + $0xa8] sm:$0xff] %vm1964, %v1953
      %2083 = vst.msk [vmem:[%s404 + $0xb0] sm:$0xff] %vm1964, %v1954
      %2084 = vst.msk [vmem:[%s404 + $0xb8] sm:$0xff] %vm1964, %v1955
      %2085 = vst.msk [vmem:[%s404 + $0xc0] sm:$0xff] %vm1964, %v1956
      %2086 = vst.msk [vmem:[%s404 + $0xc8] sm:$0xff] %vm1964, %v1957
      %2087 = vst.msk [vmem:[%s404 + $0xd0] sm:$0xff] %vm1964, %v1958
      %2088 = vst.msk [vmem:[%s404 + $0xd8] sm:$0xff] %vm1964, %v1959
      %2089 = vst.msk [vmem:[%s404 + $0xe0] sm:$0xff] %vm1964, %v1960
      %2090 = vst.msk [vmem:[%s404 + $0xe8] sm:$0xff] %vm1964, %v1961
      %2091 = vst.msk [vmem:[%s404 + $0xf0] sm:$0xff] %vm1964, %v1962
      %2092 = vst.msk [vmem:[%s404 + $0xf8] sm:$0xff] %vm1964, %v1963
      %p2093 = scmp.lt.s32.totalorder %s23, 1
      %s2094 = scalar_select %p2093, %s23, 1
      %p2095 = scmp.lt.s32.totalorder %s24, 0
      %s2096 = scalar_select %p2095, %s24, 0
      %s2097 = smul.addr %s2094, 32
      %s2098 = sadd.s32 %s2096, %s2097
      %s2099 = smul.addr %s2098, 8
      %s2100 = scalar_lea.vmem %s4, %s2099
      %p2101 = scmp.lt.s32.totalorder %s23, 1
      %s2102 = scalar_select %p2101, %s23, 1
      %p2103 = scmp.lt.s32.totalorder %s24, 0
      %s2104 = scalar_select %p2103, %s24, 0
      %s2105 = smul.addr %s2102, 32
      %s2106 = sadd.s32 %s2104, %s2105
      %s2107 = smul.addr %s2106, 8
      %s2108 = scalar_lea.vmem %s5, %s2107
      %p2109 = scmp.lt.s32.totalorder %s23, 1
      %s2110 = scalar_select %p2109, %s23, 1
      %p2111 = scmp.lt.s32.totalorder %s24, 0
      %s2112 = scalar_select %p2111, %s24, 0
      %s2113 = smul.addr %s2110, 32
      %s2114 = sadd.s32 %s2112, %s2113
      %s2115 = smul.addr %s2114, 8
      %s2116 = scalar_lea.vmem %s6, %s2115
      %p2117 = scmp.lt.s32.totalorder %s23, 1
      %s2118 = scalar_select %p2117, %s23, 1
      %p2119 = scmp.lt.s32.totalorder %s24, 0
      %s2120 = scalar_select %p2119, %s24, 0
      %s2121 = smul.addr %s2118, 32
      %s2122 = sadd.s32 %s2120, %s2121
      %s2123 = smul.addr %s2122, 8
      %s2124 = scalar_lea.vmem %s7, %s2123
      // Predicated region
      $region37: #{tpu_custom_call.1} parent=35 // pred_check
        %p2125 = pneg %p155
      $region38: #{tpu_custom_call.1} parent=35 // pred_check_branch
        %2127 = sbr.rel (%p2125) target = $region40
      $region39: #{tpu_custom_call.1} parent=35 // pred_region
        _
      $region40: #{tpu_custom_call.1} parent=35 // pred_fallthru
        _
      // Predicated region
      $region41: #{tpu_custom_call.1} parent=35 // pred_check
        %p2128 = pneg %p183
      $region42: #{tpu_custom_call.1} parent=35 // pred_check_branch
        %2130 = sbr.rel (%p2128) target = $region44
      $region43: #{tpu_custom_call.1} parent=35 // pred_region
        _
      $region44: #{tpu_custom_call.1} parent=35 // pred_fallthru
        _
      // Predicated region
      $region45: #{tpu_custom_call.1} parent=35 // pred_check
        %p2131 = pneg %p211
      $region46: #{tpu_custom_call.1} parent=35 // pred_check_branch
        %2133 = sbr.rel (%p2131) target = $region48
      $region47: #{tpu_custom_call.1} parent=35 // pred_region
        _
      $region48: #{tpu_custom_call.1} parent=35 // pred_fallthru
        _
      // Predicated region
      $region49: #{tpu_custom_call.1} parent=35 // pred_check
        %p2134 = pneg %p239
      $region50: #{tpu_custom_call.1} parent=35 // pred_check_branch
        %2136 = sbr.rel (%p2134) target = $region52
      $region51: #{tpu_custom_call.1} parent=35 // pred_region
        _
      $region52: #{tpu_custom_call.1} parent=35 // pred_fallthru
        _
    $region36: #{tpu_custom_call.1} parent=5 // pred_fallthru
      _
    %p2137 = scmp.le.s32.totalorder 2, %s14
    // Predicated region
    $region53: #{tpu_custom_call.1} parent=5 // pred_check
      %p2138 = pneg %p2137
    $region54: #{tpu_custom_call.1} parent=5 // pred_check_branch
      %2140 = sbr.rel (%p2138) target = $region56
    $region55: #{tpu_custom_call.1} parent=5 // pred_region
      %s2141 = ssub.s32 %s14, 2
      // Predicated region
      $region57: #{tpu_custom_call.1} parent=55 // pred_check
        %p2142 = pneg %p161
      $region58: #{tpu_custom_call.1} parent=55 // pred_check_branch
        %2144 = sbr.rel (%p2142) target = $region60
      $region59: #{tpu_custom_call.1} parent=55 // pred_region
        %p2145 = scmp.lt.s32.totalorder %s25, 1
        %s2146 = scalar_select %p2145, %s25, 1
        %p2147 = scmp.lt.s32.totalorder %s26, 0
        %s2148 = scalar_select %p2147, %s26, 0
        %s2149 = smul.addr %s2146, 32
        %s2150 = sadd.s32 %s2148, %s2149
        %s2151 = smul.addr %s2150, 8
        %s2152 = scalar_lea.vmem %s4, %s2151
      $region60: #{tpu_custom_call.1} parent=55 // pred_fallthru
        _
      // Predicated region
      $region61: #{tpu_custom_call.1} parent=55 // pred_check
        %p2153 = pneg %p189
      $region62: #{tpu_custom_call.1} parent=55 // pred_check_branch
        %2155 = sbr.rel (%p2153) target = $region64
      $region63: #{tpu_custom_call.1} parent=55 // pred_region
        %p2156 = scmp.lt.s32.totalorder %s25, 1
        %s2157 = scalar_select %p2156, %s25, 1
        %p2158 = scmp.lt.s32.totalorder %s26, 0
        %s2159 = scalar_select %p2158, %s26, 0
        %s2160 = smul.addr %s2157, 32
        %s2161 = sadd.s32 %s2159, %s2160
        %s2162 = smul.addr %s2161, 8
        %s2163 = scalar_lea.vmem %s5, %s2162
      $region64: #{tpu_custom_call.1} parent=55 // pred_fallthru
        _
      // Predicated region
      $region65: #{tpu_custom_call.1} parent=55 // pred_check
        %p2164 = pneg %p217
      $region66: #{tpu_custom_call.1} parent=55 // pred_check_branch
        %2166 = sbr.rel (%p2164) target = $region68
      $region67: #{tpu_custom_call.1} parent=55 // pred_region
        %p2167 = scmp.lt.s32.totalorder %s25, 1
        %s2168 = scalar_select %p2167, %s25, 1
        %p2169 = scmp.lt.s32.totalorder %s26, 0
        %s2170 = scalar_select %p2169, %s26, 0
        %s2171 = smul.addr %s2168, 32
        %s2172 = sadd.s32 %s2170, %s2171
        %s2173 = smul.addr %s2172, 8
        %s2174 = scalar_lea.vmem %s6, %s2173
      $region68: #{tpu_custom_call.1} parent=55 // pred_fallthru
        _
      // Predicated region
      $region69: #{tpu_custom_call.1} parent=55 // pred_check
        %p2175 = pneg %p245
      $region70: #{tpu_custom_call.1} parent=55 // pred_check_branch
        %2177 = sbr.rel (%p2175) target = $region72
      $region71: #{tpu_custom_call.1} parent=55 // pred_region
        %p2178 = scmp.lt.s32.totalorder %s25, 1
        %s2179 = scalar_select %p2178, %s25, 1
        %p2180 = scmp.lt.s32.totalorder %s26, 0
        %s2181 = scalar_select %p2180, %s26, 0
        %s2182 = smul.addr %s2179, 32
        %s2183 = sadd.s32 %s2181, %s2182
        %s2184 = smul.addr %s2183, 8
        %s2185 = scalar_lea.vmem %s7, %s2184
      $region72: #{tpu_custom_call.1} parent=55 // pred_fallthru
        _
    $region56: #{tpu_custom_call.1} parent=5 // pred_fallthru
      _
  $region6: #{tpu_custom_call.1} parent=0 // loop_footer
    %s18 = sadd.s32 1, %s14
  $region7: #{tpu_custom_call.1} parent=0 // loop_footer_branch
    %13 = sbr.rel target = $region3
  $region8: #{tpu_custom_call.1} parent=0 // loop_exit
    _

</llo_original>
